<compile_context>
chip_gen: v5e
topology: v5e:2x2
jax: 0.10.0
libtpu: 0.0.40
codegen_flags: <defaults>
</compile_context>

<pallas_src>
import numpy as np
import jax
import jax.numpy as jnp
from jax.experimental import pallas as pl
from jax.experimental.pallas import tpu as pltpu

NUM_DIMS = 2                                   # 2-D n-body system
HIDDEN = 32                                    # hidden_size
NUM_LAYERS = 4                                 # GNN layers
H = HIDDEN
LANE = 128

D_IN = 2 * NUM_DIMS                            # rel_feat width (4)
NUM_ORIENT = NUM_DIMS * (NUM_DIMS - 1) // 2    # 1
F0 = 3 * NUM_DIMS + NUM_ORIENT + D_IN + 2      # 13 = edge features fed to layer 1

# ---------------------------------------------------------------------------
# Packed-slab layout (static, all row offsets are multiples of 8)
# ---------------------------------------------------------------------------
OFF_L1_M1 = 0                                  # [F0, H]
OFF_L1_M2 = 16                                 # [H, H]
OFF_RES = 48                                   # [D_IN, H]
OFF_L1_U1 = 56                                 # [H, 2H]
OFF_L1_U2 = 88                                 # [2H, H]
OFF_LAYERS = 152                               # start of per-layer blocks
LAYER_M1 = 0                                   # [3H, H]  (fused send/recv/edge weight)
LAYER_M2 = 3 * H                               # [H, H]
LAYER_U1 = 4 * H                               # [H, 2H]
LAYER_U2 = 5 * H                               # [2H, H]
LAYER_STRIDE = 7 * H                           # 224
OFF_O1 = OFF_LAYERS + (NUM_LAYERS - 1) * LAYER_STRIDE   # 824
OFF_O2 = OFF_O1 + H                                     # 856
OFF_O3 = OFF_O2 + H                                     # 888   ([H, 128] zero-padded)
W_ROWS = OFF_O3 + H                                     # 920

BI_L1 = 0                                      # bias rows 0..4: m1, m2, res, u1, u2
BI_LAYERS = 5                                  # 4 per layer: m1, m2, u1, u2
BI_O = BI_LAYERS + 4 * (NUM_LAYERS - 1)        # 17, 18, 19
B_ROWS = BI_O + 3                              # 20


# ---------------------------------------------------------------------------
# Localizer (plain JAX, runs inside the same jit as the kernel)
# ---------------------------------------------------------------------------
def _rotate(x, R):
    return jnp.einsum('...ij,...j->...i', R, x)


def _vel_to_rotation_matrix_2d(vel):
    theta = jnp.arctan2(vel[..., 1], vel[..., 0])
    c, s = jnp.cos(theta), jnp.sin(theta)
    return jnp.stack([jnp.stack([c, -s], -1),
                      jnp.stack([s, c], -1)], -2)                     # [..., 2, 2]


def localize(inputs, send, recv):
    """inputs: [N, 2*num_dims] = [pos, vel]. Returns rel_feat [N,4], R [N,2,2], edge_attr [E,11]."""
    d = NUM_DIMS
    vel = inputs[..., d:2 * d]
    R = _vel_to_rotation_matrix_2d(vel)                               # [N,2,2]
    Rinv = jnp.swapaxes(R, -1, -2)
    canon_vel = _rotate(vel, Rinv)
    rel_feat = jnp.concatenate([jnp.zeros_like(canon_vel), canon_vel], -1)   # [N,4]

    x_j = inputs[send]
    x_i = inputs[recv]
    R_i = _vel_to_rotation_matrix_2d(x_i[..., d:2 * d])
    R_i_inv = jnp.swapaxes(R_i, -1, -2)
    rel_pos = x_j[..., :d] - x_i[..., :d]
    rot_rel_pos = _rotate(rel_pos, R_i_inv)
    send_R = _vel_to_rotation_matrix_2d(x_j[..., d:2 * d])
    rot_or = R_i_inv @ send_R
    rot_euler = (jnp.arctan2(rot_or[..., 1, 0], rot_or[..., 0, 0]) / np.pi)[..., None]
    node_dist = jnp.linalg.norm(rel_pos, axis=-1, keepdims=True)
    sph_theta = jnp.arctan2(rot_rel_pos[..., 1], rot_rel_pos[..., 0])[..., None]
    rot_vel = _rotate(x_j[..., d:2 * d], R_i_inv)
    edge_attr = jnp.concatenate(
        [rot_rel_pos, rot_euler, node_dist, sph_theta, rot_vel], -1)  # [E,7]
    edge_attr = jnp.concatenate([edge_attr, rel_feat[recv]], -1)      # [E,11]
    return rel_feat, R, edge_attr


# ---------------------------------------------------------------------------
# Packing helpers (run once at setup, numpy)
# ---------------------------------------------------------------------------
def pack_params(params):
    (l1_mw1, l1_mb1, l1_mw2, l1_mb2, res_w, res_b, l1_uw1, l1_ub1, l1_uw2, l1_ub2,
     mw1, mb1, mw2, mb2, uw1, ub1, uw2, ub2,
     ow1, ob1, ow2, ob2, ow3, ob3) = params
    W = np.zeros((W_ROWS, LANE), np.float32)
    B = np.zeros((B_ROWS, LANE), np.float32)

    def putw(off, w):
        w = np.asarray(w, np.float32)
        W[off:off + w.shape[0], :w.shape[1]] = w

    def putb(i, b):
        b = np.asarray(b, np.float32).reshape(-1)
        B[i, :b.shape[0]] = b

    putw(OFF_L1_M1, l1_mw1); putb(BI_L1 + 0, l1_mb1)
    putw(OFF_L1_M2, l1_mw2); putb(BI_L1 + 1, l1_mb2)
    putw(OFF_RES, res_w);    putb(BI_L1 + 2, res_b)
    putw(OFF_L1_U1, l1_uw1); putb(BI_L1 + 3, l1_ub1)
    putw(OFF_L1_U2, l1_uw2); putb(BI_L1 + 4, l1_ub2)
    for l in range(NUM_LAYERS - 1):
        base = OFF_LAYERS + l * LAYER_STRIDE
        bi = BI_LAYERS + 4 * l
        putw(base + LAYER_M1, mw1[l]); putb(bi + 0, mb1[l])
        putw(base + LAYER_M2, mw2[l]); putb(bi + 1, mb2[l])
        putw(base + LAYER_U1, uw1[l]); putb(bi + 2, ub1[l])
        putw(base + LAYER_U2, uw2[l]); putb(bi + 3, ub2[l])
    putw(OFF_O1, ow1); putb(BI_O + 0, ob1)
    putw(OFF_O2, ow2); putb(BI_O + 1, ob2)
    putw(OFF_O3, ow3); putb(BI_O + 2, ob3)     # ow3 [H,2] zero-padded to 128 lanes
    return jnp.asarray(W), jnp.asarray(B)


def make_graph_slab(send, recv, N):
    """Static topology -> [2E+N, 128] slab: rows 0:2E = [Gs;Gr] one-hots, rows 2E:2E+N = scatter-mean."""
    send = np.asarray(send)
    recv = np.asarray(recv)
    E = send.shape[0]
    assert E % 8 == 0, "edge count must be a multiple of 8 for aligned sublane slices"
    Gs = np.zeros((E, N), np.float32); Gs[np.arange(E), send] = 1.0
    Gr = np.zeros((E, N), np.float32); Gr[np.arange(E), recv] = 1.0
    cnt = np.maximum(Gr.sum(0), 1.0)
    Am = (Gr / cnt[None, :]).T                                        # [N, E]
    slab = np.zeros((2 * E + N, LANE), np.float32)
    slab[0:2 * E, :N] = np.concatenate([Gs, Gr], 0)
    slab[2 * E:2 * E + N, :E] = Am
    return jnp.asarray(slab)


# ---------------------------------------------------------------------------
# Pallas kernel: 4 GNN layers + out_mlp, everything resident in VMEM
# ---------------------------------------------------------------------------
def make_kernel(E, N):
    def kernel(act_ref, g_ref, w_ref, b_ref, out_ref):
        f32 = jnp.float32

        def dot(a, b):
            return jnp.dot(a, b, preferred_element_type=f32)

        def silu(v):
            # exp and the approximate reciprocal both go to the EUP slot
            return v * pl.reciprocal(1.0 + jnp.exp(-v), approx=True)

        def W(off, rows, cols):
            return w_ref[off:off + rows, 0:cols]

        def B(i, cols):
            return b_ref[i:i + 1, 0:cols]

        ea = act_ref[0:E, 0:F0]                  # [E, 13]
        rf = act_ref[E:E + N, 0:D_IN]            # [N, 4]
        G = g_ref[0:2 * E, 0:N]                  # [2E, N]  (send one-hot ; recv one-hot)
        Am = g_ref[2 * E:2 * E + N, 0:E]         # [N, E]   scatter-mean matrix

        # ---- GNN layer 1 (only_edge_attr=True) -----------------------------
        m = silu(dot(ea, W(OFF_L1_M1, F0, H)) + B(BI_L1 + 0, H))
        m = silu(dot(m, W(OFF_L1_M2, H, H)) + B(BI_L1 + 1, H))
        x = dot(rf, W(OFF_RES, D_IN, H)) + B(BI_L1 + 2, H) + dot(Am, m)
        u = silu(dot(x, W(OFF_L1_U1, H, 2 * H)) + B(BI_L1 + 3, 2 * H))
        x = x + dot(u, W(OFF_L1_U2, 2 * H, H)) + B(BI_L1 + 4, H)
        edge = m

        # ---- GNN layers 2..4 -------------------------------------------------
        for l in range(NUM_LAYERS - 1):
            base = OFF_LAYERS + l * LAYER_STRIDE
            bi = BI_LAYERS + 4 * l
            gathered = dot(G, x)                                       # one matmul for both gathers
            msg_in = jnp.concatenate(
                [gathered[0:E], gathered[E:2 * E], edge], axis=-1)     # [E, 3H]
            m = silu(dot(msg_in, W(base + LAYER_M1, 3 * H, H)) + B(bi + 0, H))
            m = silu(dot(m, W(base + LAYER_M2, H, H)) + B(bi + 1, H))
            x = x + dot(Am, m)                                         # identity res + scatter-mean
            u = silu(dot(x, W(base + LAYER_U1, H, 2 * H)) + B(bi + 2, 2 * H))
            x = x + dot(u, W(base + LAYER_U2, 2 * H, H)) + B(bi + 3, H)
            edge = m

        # ---- out_mlp (Dropout is identity at inference) ----------------------
        hh = silu(dot(x, W(OFF_O1, H, H)) + B(BI_O + 0, H))
        hh = silu(dot(hh, W(OFF_O2, H, H)) + B(BI_O + 1, H))
        # final weight is zero-padded to 128 output lanes -> lane-dense store
        out_ref[...] = dot(hh, W(OFF_O3, H, LANE)) + B(BI_O + 2, LANE)
    return kernel


# ---------------------------------------------------------------------------
# Builder: precompute static slabs once, return a jitted forward closure
# ---------------------------------------------------------------------------
def build_locs_forward(params, send, recv, N):
    send = np.asarray(send)
    recv = np.asarray(recv)
    E = int(send.shape[0])

    wslab, bslab = pack_params(params)             # packed once
    gslab = make_graph_slab(send, recv, N)         # static topology, built once
    send_j = jnp.asarray(send, jnp.int32)
    recv_j = jnp.asarray(recv, jnp.int32)

    gnn = pl.pallas_call(
        make_kernel(E, N),
        out_shape=jax.ShapeDtypeStruct((N, LANE), jnp.float32),
        in_specs=[pl.BlockSpec(memory_space=pltpu.MemorySpace.VMEM)] * 4,
        out_specs=pl.BlockSpec(memory_space=pltpu.MemorySpace.VMEM),
    )
    # TODO(synk): for batched graphs (batch*num_objects >> 8) add a leading grid axis
    # with dimension_semantics=("parallel",) to use both v7x TensorCores / fill the MXU.

    @jax.jit
    def forward(h, x, vel, edge_attr_orig):
        """LoCS.forward(h, x, edges, vel, edge_attr_orig); `h` is unused (as in PyTorch)."""
        del h
        inputs = jnp.concatenate([x, vel], -1)                         # [N, 4]
        rel_feat, R, edge_attr = localize(inputs, send_j, recv_j)
        ea = jnp.concatenate([edge_attr, edge_attr_orig], -1)          # [E, 13]
        act = jnp.concatenate(
            [jnp.pad(ea, ((0, 0), (0, LANE - F0))),
             jnp.pad(rel_feat, ((0, 0), (0, LANE - D_IN)))], axis=0)   # [E+N, 128] lane-dense
        pred = gnn(act, gslab, wslab, bslab)[:, :NUM_DIMS]             # [N, 2]
        return x + _rotate(pred, R)                                    # Globalizer + residual
    return forward


# ---------------------------------------------------------------------------
# Pure-JAX reference (mirrors the PyTorch semantics) for validation
# ---------------------------------------------------------------------------
def locs_forward_ref(params, h, x, edges, vel, edge_attr_orig):
    del h
    (l1_mw1, l1_mb1, l1_mw2, l1_mb2, res_w, res_b, l1_uw1, l1_ub1, l1_uw2, l1_ub2,
     mw1, mb1, mw2, mb2, uw1, ub1, uw2, ub2,
     ow1, ob1, ow2, ob2, ow3, ob3) = params
    send, recv = edges
    N = x.shape[0]
    inputs = jnp.concatenate([x, vel], -1)
    rel_feat, R, edge_attr = localize(inputs, send, recv)
    ea = jnp.concatenate([edge_attr, edge_attr_orig], -1)
    silu = jax.nn.silu

    def scatter_mean(vals):
        s = jax.ops.segment_sum(vals, recv, num_segments=N)
        cnt = jax.ops.segment_sum(jnp.ones_like(recv, jnp.float32), recv, num_segments=N)
        return s / jnp.maximum(cnt, 1.0)[:, None]

    m = silu(ea @ l1_mw1 + l1_mb1)
    m = silu(m @ l1_mw2 + l1_mb2)
    xx = rel_feat @ res_w + res_b + scatter_mean(m)
    u = silu(xx @ l1_uw1 + l1_ub1)
    xx = xx + (u @ l1_uw2 + l1_ub2)
    edge = m
    for l in range(NUM_LAYERS - 1):
        mi = jnp.concatenate([xx[send], xx[recv], edge], -1)
        m = silu(mi @ mw1[l] + mb1[l])
        m = silu(m @ mw2[l] + mb2[l])
        xx = xx + scatter_mean(m)
        u = silu(xx @ uw1[l] + ub1[l])
        xx = xx + (u @ uw2[l] + ub2[l])
        edge = m
    hh = silu(xx @ ow1 + ob1)
    hh = silu(hh @ ow2 + ob2)
    pred = hh @ ow3 + ob3
    return x + _rotate(pred, R)


# ---------------------------------------------------------------------------
# Deterministic parameter init (PyTorch nn.Linear-style uniform bounds)
# ---------------------------------------------------------------------------
def init_params(key):
    d = NUM_DIMS
    input_size = 2 * d
    keys = iter(jax.random.split(key, 64))

    def lin(fan_in, fan_out):
        b = 1.0 / np.sqrt(fan_in)
        w = jax.random.uniform(next(keys), (fan_in, fan_out), jnp.float32, -b, b)
        bias = jax.random.uniform(next(keys), (1, fan_out), jnp.float32, -b, b)
        return w, bias

    l1_mw1, l1_mb1 = lin(F0, H)
    l1_mw2, l1_mb2 = lin(H, H)
    res_w, res_b = lin(input_size, H)
    l1_uw1, l1_ub1 = lin(H, 2 * H)
    l1_uw2, l1_ub2 = lin(2 * H, H)

    def stack_lin(n, fi, fo):
        ws, bs = zip(*[lin(fi, fo) for _ in range(n)])
        return jnp.stack(ws), jnp.stack(bs)

    mw1, mb1 = stack_lin(NUM_LAYERS - 1, 3 * H, H)    # message_fn first Linear, kept fused [3H,H]
    mw2, mb2 = stack_lin(NUM_LAYERS - 1, H, H)
    uw1, ub1 = stack_lin(NUM_LAYERS - 1, H, 2 * H)
    uw2, ub2 = stack_lin(NUM_LAYERS - 1, 2 * H, H)

    ow1, ob1 = lin(H, H)
    ow2, ob2 = lin(H, H)
    ow3, ob3 = lin(H, d)

    return (l1_mw1, l1_mb1, l1_mw2, l1_mb2, res_w, res_b, l1_uw1, l1_ub1, l1_uw2, l1_ub2,
            mw1, mb1, mw2, mb2, uw1, ub1, uw2, ub2,
            ow1, ob1, ow2, ob2, ow3, ob3)


if __name__ == "__main__":
    key = jax.random.PRNGKey(0)
    N = 8                                              # batch_size * num_objects (flattened)

    # fully-connected directed graph without self-loops
    off = np.ones((N, N)) - np.eye(N)
    send_np, recv_np = np.nonzero(off)
    E = int(send_np.shape[0])                          # 56

    k = jax.random.split(key, 5)
    x = jax.random.normal(k[0], (N, NUM_DIMS), jnp.float32)           # positions
    vel = jax.random.normal(k[1], (N, NUM_DIMS), jnp.float32)         # velocities
    h_unused = jax.random.normal(k[2], (N, HIDDEN), jnp.float32)      # `h` is unused by LoCS.forward
    edge_attr_orig = jax.random.normal(k[3], (E, 2), jnp.float32)     # initial_edge_features = 2
    params = init_params(k[4])

    forward = build_locs_forward(params, send_np, recv_np, N)
    out = jax.block_until_ready(forward(h_unused, x, vel, edge_attr_orig))

    assert out.shape == (N, NUM_DIMS), out.shape
    assert bool(jnp.all(jnp.isfinite(out)))

    ref = locs_forward_ref(
        params, h_unused, x,
        (jnp.asarray(send_np, jnp.int32), jnp.asarray(recv_np, jnp.int32)),
        vel, edge_attr_orig)
    err = float(jnp.max(jnp.abs(out - ref)))
    # tolerance tightened from 5e-2; kept above 1e-4 only because the in-kernel SiLU
    # uses the approximate EUP reciprocal (pl.reciprocal(..., approx=True)).
    if err > 1e-2:
        raise AssertionError(f"kernel/reference mismatch, max abs err = {err}")

    # TODO(synk): nn.Dropout is treated as identity (inference mode); training-mode
    # stochastic dropout would need pltpu.prng_* inside the kernel.
    print("KERNEL_OK")
</pallas_src>

<mosaic_0001>
module attributes {stable_mosaic.version = 11 : i64} {
  func.func @kernel(%arg0: memref<64x128xf32, #tpu.memory_space<vmem>>, %arg1: memref<120x128xf32, #tpu.memory_space<vmem>>, %arg2: memref<920x128xf32, #tpu.memory_space<vmem>>, %arg3: memref<20x128xf32, #tpu.memory_space<vmem>>, %arg4: memref<8x128xf32, #tpu.memory_space<vmem>>) attributes {dimension_semantics = [], scalar_prefetch = 0 : i64, scratch_operands = 0 : i64, tpu.core_type = #tpu.core_type<tc>} {
    %c0 = arith.constant 0 : index
    %c0_0 = arith.constant 0 : index
    %0 = vector.load %arg0[%c0, %c0_0] : memref<64x128xf32, #tpu.memory_space<vmem>>, vector<56x13xf32>
    %c56 = arith.constant 56 : index
    %c0_1 = arith.constant 0 : index
    %1 = vector.load %arg0[%c56, %c0_1] : memref<64x128xf32, #tpu.memory_space<vmem>>, vector<8x4xf32>
    %c0_2 = arith.constant 0 : index
    %c0_3 = arith.constant 0 : index
    %2 = vector.load %arg1[%c0_2, %c0_3] : memref<120x128xf32, #tpu.memory_space<vmem>>, vector<112x8xf32>
    %c112 = arith.constant 112 : index
    %c0_4 = arith.constant 0 : index
    %3 = vector.load %arg1[%c112, %c0_4] : memref<120x128xf32, #tpu.memory_space<vmem>>, vector<8x56xf32>
    %c0_5 = arith.constant 0 : index
    %c0_6 = arith.constant 0 : index
    %4 = vector.load %arg2[%c0_5, %c0_6] : memref<920x128xf32, #tpu.memory_space<vmem>>, vector<13x32xf32>
    %cst = arith.constant dense<0.000000e+00> : vector<56x32xf32>
    %5 = tpu.matmul %0, %4, %cst {dimension_numbers = #tpu.dot_dimension_numbers<[1], [0], [0], [1], [0, 0, 1, 1], [], []>} : vector<56x13xf32>, vector<13x32xf32>, vector<56x32xf32> -> vector<56x32xf32>
    %c0_7 = arith.constant 0 : index
    %c0_8 = arith.constant 0 : index
    %6 = vector.load %arg3[%c0_7, %c0_8] : memref<20x128xf32, #tpu.memory_space<vmem>>, vector<1x32xf32>
    %7 = vector.broadcast %6 : vector<1x32xf32> to vector<56x32xf32>
    %8 = arith.addf %5, %7 : vector<56x32xf32>
    %cst_9 = arith.constant 0.000000e+00 : f32
    %9 = vector.broadcast %cst_9 : f32 to vector<56x32xf32>
    %10 = arith.subf %9, %8 : vector<56x32xf32>
    %11 = math.exp %10 : vector<56x32xf32>
    %cst_10 = arith.constant 1.000000e+00 : f32
    %12 = vector.broadcast %cst_10 : f32 to vector<56x32xf32>
    %13 = arith.addf %12, %11 : vector<56x32xf32>
    %14 = tpu.reciprocal %13 {approx = true} : vector<56x32xf32> -> vector<56x32xf32>
    %15 = arith.mulf %8, %14 : vector<56x32xf32>
    %c16 = arith.constant 16 : index
    %c0_11 = arith.constant 0 : index
    %16 = vector.load %arg2[%c16, %c0_11] : memref<920x128xf32, #tpu.memory_space<vmem>>, vector<32x32xf32>
    %cst_12 = arith.constant dense<0.000000e+00> : vector<56x32xf32>
    %17 = tpu.matmul %15, %16, %cst_12 {dimension_numbers = #tpu.dot_dimension_numbers<[1], [0], [0], [1], [0, 0, 1, 1], [], []>} : vector<56x32xf32>, vector<32x32xf32>, vector<56x32xf32> -> vector<56x32xf32>
    %c1 = arith.constant 1 : index
    %c0_13 = arith.constant 0 : index
    %18 = vector.load %arg3[%c1, %c0_13] : memref<20x128xf32, #tpu.memory_space<vmem>>, vector<1x32xf32>
    %19 = vector.broadcast %18 : vector<1x32xf32> to vector<56x32xf32>
    %20 = arith.addf %17, %19 : vector<56x32xf32>
    %cst_14 = arith.constant 0.000000e+00 : f32
    %21 = vector.broadcast %cst_14 : f32 to vector<56x32xf32>
    %22 = arith.subf %21, %20 : vector<56x32xf32>
    %23 = math.exp %22 : vector<56x32xf32>
    %cst_15 = arith.constant 1.000000e+00 : f32
    %24 = vector.broadcast %cst_15 : f32 to vector<56x32xf32>
    %25 = arith.addf %24, %23 : vector<56x32xf32>
    %26 = tpu.reciprocal %25 {approx = true} : vector<56x32xf32> -> vector<56x32xf32>
    %27 = arith.mulf %20, %26 : vector<56x32xf32>
    %c48 = arith.constant 48 : index
    %c0_16 = arith.constant 0 : index
    %28 = vector.load %arg2[%c48, %c0_16] : memref<920x128xf32, #tpu.memory_space<vmem>>, vector<4x32xf32>
    %cst_17 = arith.constant dense<0.000000e+00> : vector<8x32xf32>
    %29 = tpu.matmul %1, %28, %cst_17 {dimension_numbers = #tpu.dot_dimension_numbers<[1], [0], [0], [1], [0, 0, 1, 1], [], []>} : vector<8x4xf32>, vector<4x32xf32>, vector<8x32xf32> -> vector<8x32xf32>
    %c2 = arith.constant 2 : index
    %c0_18 = arith.constant 0 : index
    %30 = vector.load %arg3[%c2, %c0_18] : memref<20x128xf32, #tpu.memory_space<vmem>>, vector<1x32xf32>
    %31 = vector.broadcast %30 : vector<1x32xf32> to vector<8x32xf32>
    %32 = arith.addf %29, %31 : vector<8x32xf32>
    %cst_19 = arith.constant dense<0.000000e+00> : vector<8x32xf32>
    %33 = tpu.matmul %3, %27, %cst_19 {dimension_numbers = #tpu.dot_dimension_numbers<[1], [0], [0], [1], [0, 0, 1, 1], [], []>} : vector<8x56xf32>, vector<56x32xf32>, vector<8x32xf32> -> vector<8x32xf32>
    %34 = arith.addf %32, %33 : vector<8x32xf32>
    %c56_20 = arith.constant 56 : index
    %c0_21 = arith.constant 0 : index
    %35 = vector.load %arg2[%c56_20, %c0_21] : memref<920x128xf32, #tpu.memory_space<vmem>>, vector<32x64xf32>
    %cst_22 = arith.constant dense<0.000000e+00> : vector<8x64xf32>
    %36 = tpu.matmul %34, %35, %cst_22 {dimension_numbers = #tpu.dot_dimension_numbers<[1], [0], [0], [1], [0, 0, 1, 1], [], []>} : vector<8x32xf32>, vector<32x64xf32>, vector<8x64xf32> -> vector<8x64xf32>
    %c3 = arith.constant 3 : index
    %c0_23 = arith.constant 0 : index
    %37 = vector.load %arg3[%c3, %c0_23] : memref<20x128xf32, #tpu.memory_space<vmem>>, vector<1x64xf32>
    %38 = vector.broadcast %37 : vector<1x64xf32> to vector<8x64xf32>
    %39 = arith.addf %36, %38 : vector<8x64xf32>
    %cst_24 = arith.constant 0.000000e+00 : f32
    %40 = vector.broadcast %cst_24 : f32 to vector<8x64xf32>
    %41 = arith.subf %40, %39 : vector<8x64xf32>
    %42 = math.exp %41 : vector<8x64xf32>
    %cst_25 = arith.constant 1.000000e+00 : f32
    %43 = vector.broadcast %cst_25 : f32 to vector<8x64xf32>
    %44 = arith.addf %43, %42 : vector<8x64xf32>
    %45 = tpu.reciprocal %44 {approx = true} : vector<8x64xf32> -> vector<8x64xf32>
    %46 = arith.mulf %39, %45 : vector<8x64xf32>
    %c88 = arith.constant 88 : index
    %c0_26 = arith.constant 0 : index
    %47 = vector.load %arg2[%c88, %c0_26] : memref<920x128xf32, #tpu.memory_space<vmem>>, vector<64x32xf32>
    %cst_27 = arith.constant dense<0.000000e+00> : vector<8x32xf32>
    %48 = tpu.matmul %46, %47, %cst_27 {dimension_numbers = #tpu.dot_dimension_numbers<[1], [0], [0], [1], [0, 0, 1, 1], [], []>} : vector<8x64xf32>, vector<64x32xf32>, vector<8x32xf32> -> vector<8x32xf32>
    %49 = arith.addf %34, %48 : vector<8x32xf32>
    %c4 = arith.constant 4 : index
    %c0_28 = arith.constant 0 : index
    %50 = vector.load %arg3[%c4, %c0_28] : memref<20x128xf32, #tpu.memory_space<vmem>>, vector<1x32xf32>
    %51 = vector.broadcast %50 : vector<1x32xf32> to vector<8x32xf32>
    %52 = arith.addf %49, %51 : vector<8x32xf32>
    %cst_29 = arith.constant dense<0.000000e+00> : vector<112x32xf32>
    %53 = tpu.matmul %2, %52, %cst_29 {dimension_numbers = #tpu.dot_dimension_numbers<[1], [0], [0], [1], [0, 0, 1, 1], [], []>} : vector<112x8xf32>, vector<8x32xf32>, vector<112x32xf32> -> vector<112x32xf32>
    %54 = vector.extract_strided_slice %53 {offsets = [0, 0], sizes = [56, 32], strides = [1, 1]} : vector<112x32xf32> to vector<56x32xf32>
    %55 = vector.extract_strided_slice %53 {offsets = [56, 0], sizes = [56, 32], strides = [1, 1]} : vector<112x32xf32> to vector<56x32xf32>
    %56 = tpu.concatenate %54, %55, %27 in 1 : vector<56x32xf32>, vector<56x32xf32>, vector<56x32xf32> -> vector<56x96xf32>
    %c152 = arith.constant 152 : index
    %c0_30 = arith.constant 0 : index
    %57 = vector.load %arg2[%c152, %c0_30] : memref<920x128xf32, #tpu.memory_space<vmem>>, vector<96x32xf32>
    %cst_31 = arith.constant dense<0.000000e+00> : vector<56x32xf32>
    %58 = tpu.matmul %56, %57, %cst_31 {dimension_numbers = #tpu.dot_dimension_numbers<[1], [0], [0], [1], [0, 0, 1, 1], [], []>} : vector<56x96xf32>, vector<96x32xf32>, vector<56x32xf32> -> vector<56x32xf32>
    %c5 = arith.constant 5 : index
    %c0_32 = arith.constant 0 : index
    %59 = vector.load %arg3[%c5, %c0_32] : memref<20x128xf32, #tpu.memory_space<vmem>>, vector<1x32xf32>
    %60 = vector.broadcast %59 : vector<1x32xf32> to vector<56x32xf32>
    %61 = arith.addf %58, %60 : vector<56x32xf32>
    %cst_33 = arith.constant 0.000000e+00 : f32
    %62 = vector.broadcast %cst_33 : f32 to vector<56x32xf32>
    %63 = arith.subf %62, %61 : vector<56x32xf32>
    %64 = math.exp %63 : vector<56x32xf32>
    %cst_34 = arith.constant 1.000000e+00 : f32
    %65 = vector.broadcast %cst_34 : f32 to vector<56x32xf32>
    %66 = arith.addf %65, %64 : vector<56x32xf32>
    %67 = tpu.reciprocal %66 {approx = true} : vector<56x32xf32> -> vector<56x32xf32>
    %68 = arith.mulf %61, %67 : vector<56x32xf32>
    %c248 = arith.constant 248 : index
    %c0_35 = arith.constant 0 : index
    %69 = vector.load %arg2[%c248, %c0_35] : memref<920x128xf32, #tpu.memory_space<vmem>>, vector<32x32xf32>
    %cst_36 = arith.constant dense<0.000000e+00> : vector<56x32xf32>
    %70 = tpu.matmul %68, %69, %cst_36 {dimension_numbers = #tpu.dot_dimension_numbers<[1], [0], [0], [1], [0, 0, 1, 1], [], []>} : vector<56x32xf32>, vector<32x32xf32>, vector<56x32xf32> -> vector<56x32xf32>
    %c6 = arith.constant 6 : index
    %c0_37 = arith.constant 0 : index
    %71 = vector.load %arg3[%c6, %c0_37] : memref<20x128xf32, #tpu.memory_space<vmem>>, vector<1x32xf32>
    %72 = vector.broadcast %71 : vector<1x32xf32> to vector<56x32xf32>
    %73 = arith.addf %70, %72 : vector<56x32xf32>
    %cst_38 = arith.constant 0.000000e+00 : f32
    %74 = vector.broadcast %cst_38 : f32 to vector<56x32xf32>
    %75 = arith.subf %74, %73 : vector<56x32xf32>
    %76 = math.exp %75 : vector<56x32xf32>
    %cst_39 = arith.constant 1.000000e+00 : f32
    %77 = vector.broadcast %cst_39 : f32 to vector<56x32xf32>
    %78 = arith.addf %77, %76 : vector<56x32xf32>
    %79 = tpu.reciprocal %78 {approx = true} : vector<56x32xf32> -> vector<56x32xf32>
    %80 = arith.mulf %73, %79 : vector<56x32xf32>
    %cst_40 = arith.constant dense<0.000000e+00> : vector<8x32xf32>
    %81 = tpu.matmul %3, %80, %cst_40 {dimension_numbers = #tpu.dot_dimension_numbers<[1], [0], [0], [1], [0, 0, 1, 1], [], []>} : vector<8x56xf32>, vector<56x32xf32>, vector<8x32xf32> -> vector<8x32xf32>
    %82 = arith.addf %52, %81 : vector<8x32xf32>
    %c280 = arith.constant 280 : index
    %c0_41 = arith.constant 0 : index
    %83 = vector.load %arg2[%c280, %c0_41] : memref<920x128xf32, #tpu.memory_space<vmem>>, vector<32x64xf32>
    %cst_42 = arith.constant dense<0.000000e+00> : vector<8x64xf32>
    %84 = tpu.matmul %82, %83, %cst_42 {dimension_numbers = #tpu.dot_dimension_numbers<[1], [0], [0], [1], [0, 0, 1, 1], [], []>} : vector<8x32xf32>, vector<32x64xf32>, vector<8x64xf32> -> vector<8x64xf32>
    %c7 = arith.constant 7 : index
    %c0_43 = arith.constant 0 : index
    %85 = vector.load %arg3[%c7, %c0_43] : memref<20x128xf32, #tpu.memory_space<vmem>>, vector<1x64xf32>
    %86 = vector.broadcast %85 : vector<1x64xf32> to vector<8x64xf32>
    %87 = arith.addf %84, %86 : vector<8x64xf32>
    %cst_44 = arith.constant 0.000000e+00 : f32
    %88 = vector.broadcast %cst_44 : f32 to vector<8x64xf32>
    %89 = arith.subf %88, %87 : vector<8x64xf32>
    %90 = math.exp %89 : vector<8x64xf32>
    %cst_45 = arith.constant 1.000000e+00 : f32
    %91 = vector.broadcast %cst_45 : f32 to vector<8x64xf32>
    %92 = arith.addf %91, %90 : vector<8x64xf32>
    %93 = tpu.reciprocal %92 {approx = true} : vector<8x64xf32> -> vector<8x64xf32>
    %94 = arith.mulf %87, %93 : vector<8x64xf32>
    %c312 = arith.constant 312 : index
    %c0_46 = arith.constant 0 : index
    %95 = vector.load %arg2[%c312, %c0_46] : memref<920x128xf32, #tpu.memory_space<vmem>>, vector<64x32xf32>
    %cst_47 = arith.constant dense<0.000000e+00> : vector<8x32xf32>
    %96 = tpu.matmul %94, %95, %cst_47 {dimension_numbers = #tpu.dot_dimension_numbers<[1], [0], [0], [1], [0, 0, 1, 1], [], []>} : vector<8x64xf32>, vector<64x32xf32>, vector<8x32xf32> -> vector<8x32xf32>
    %97 = arith.addf %82, %96 : vector<8x32xf32>
    %c8 = arith.constant 8 : index
    %c0_48 = arith.constant 0 : index
    %98 = vector.load %arg3[%c8, %c0_48] : memref<20x128xf32, #tpu.memory_space<vmem>>, vector<1x32xf32>
    %99 = vector.broadcast %98 : vector<1x32xf32> to vector<8x32xf32>
    %100 = arith.addf %97, %99 : vector<8x32xf32>
    %cst_49 = arith.constant dense<0.000000e+00> : vector<112x32xf32>
    %101 = tpu.matmul %2, %100, %cst_49 {dimension_numbers = #tpu.dot_dimension_numbers<[1], [0], [0], [1], [0, 0, 1, 1], [], []>} : vector<112x8xf32>, vector<8x32xf32>, vector<112x32xf32> -> vector<112x32xf32>
    %102 = vector.extract_strided_slice %101 {offsets = [0, 0], sizes = [56, 32], strides = [1, 1]} : vector<112x32xf32> to vector<56x32xf32>
    %103 = vector.extract_strided_slice %101 {offsets = [56, 0], sizes = [56, 32], strides = [1, 1]} : vector<112x32xf32> to vector<56x32xf32>
    %104 = tpu.concatenate %102, %103, %80 in 1 : vector<56x32xf32>, vector<56x32xf32>, vector<56x32xf32> -> vector<56x96xf32>
    %c376 = arith.constant 376 : index
    %c0_50 = arith.constant 0 : index
    %105 = vector.load %arg2[%c376, %c0_50] : memref<920x128xf32, #tpu.memory_space<vmem>>, vector<96x32xf32>
    %cst_51 = arith.constant dense<0.000000e+00> : vector<56x32xf32>
    %106 = tpu.matmul %104, %105, %cst_51 {dimension_numbers = #tpu.dot_dimension_numbers<[1], [0], [0], [1], [0, 0, 1, 1], [], []>} : vector<56x96xf32>, vector<96x32xf32>, vector<56x32xf32> -> vector<56x32xf32>
    %c9 = arith.constant 9 : index
    %c0_52 = arith.constant 0 : index
    %107 = vector.load %arg3[%c9, %c0_52] : memref<20x128xf32, #tpu.memory_space<vmem>>, vector<1x32xf32>
    %108 = vector.broadcast %107 : vector<1x32xf32> to vector<56x32xf32>
    %109 = arith.addf %106, %108 : vector<56x32xf32>
    %cst_53 = arith.constant 0.000000e+00 : f32
    %110 = vector.broadcast %cst_53 : f32 to vector<56x32xf32>
    %111 = arith.subf %110, %109 : vector<56x32xf32>
    %112 = math.exp %111 : vector<56x32xf32>
    %cst_54 = arith.constant 1.000000e+00 : f32
    %113 = vector.broadcast %cst_54 : f32 to vector<56x32xf32>
    %114 = arith.addf %113, %112 : vector<56x32xf32>
    %115 = tpu.reciprocal %114 {approx = true} : vector<56x32xf32> -> vector<56x32xf32>
    %116 = arith.mulf %109, %115 : vector<56x32xf32>
    %c472 = arith.constant 472 : index
    %c0_55 = arith.constant 0 : index
    %117 = vector.load %arg2[%c472, %c0_55] : memref<920x128xf32, #tpu.memory_space<vmem>>, vector<32x32xf32>
    %cst_56 = arith.constant dense<0.000000e+00> : vector<56x32xf32>
    %118 = tpu.matmul %116, %117, %cst_56 {dimension_numbers = #tpu.dot_dimension_numbers<[1], [0], [0], [1], [0, 0, 1, 1], [], []>} : vector<56x32xf32>, vector<32x32xf32>, vector<56x32xf32> -> vector<56x32xf32>
    %c10 = arith.constant 10 : index
    %c0_57 = arith.constant 0 : index
    %119 = vector.load %arg3[%c10, %c0_57] : memref<20x128xf32, #tpu.memory_space<vmem>>, vector<1x32xf32>
    %120 = vector.broadcast %119 : vector<1x32xf32> to vector<56x32xf32>
    %121 = arith.addf %118, %120 : vector<56x32xf32>
    %cst_58 = arith.constant 0.000000e+00 : f32
    %122 = vector.broadcast %cst_58 : f32 to vector<56x32xf32>
    %123 = arith.subf %122, %121 : vector<56x32xf32>
    %124 = math.exp %123 : vector<56x32xf32>
    %cst_59 = arith.constant 1.000000e+00 : f32
    %125 = vector.broadcast %cst_59 : f32 to vector<56x32xf32>
    %126 = arith.addf %125, %124 : vector<56x32xf32>
    %127 = tpu.reciprocal %126 {approx = true} : vector<56x32xf32> -> vector<56x32xf32>
    %128 = arith.mulf %121, %127 : vector<56x32xf32>
    %cst_60 = arith.constant dense<0.000000e+00> : vector<8x32xf32>
    %129 = tpu.matmul %3, %128, %cst_60 {dimension_numbers = #tpu.dot_dimension_numbers<[1], [0], [0], [1], [0, 0, 1, 1], [], []>} : vector<8x56xf32>, vector<56x32xf32>, vector<8x32xf32> -> vector<8x32xf32>
    %130 = arith.addf %100, %129 : vector<8x32xf32>
    %c504 = arith.constant 504 : index
    %c0_61 = arith.constant 0 : index
    %131 = vector.load %arg2[%c504, %c0_61] : memref<920x128xf32, #tpu.memory_space<vmem>>, vector<32x64xf32>
    %cst_62 = arith.constant dense<0.000000e+00> : vector<8x64xf32>
    %132 = tpu.matmul %130, %131, %cst_62 {dimension_numbers = #tpu.dot_dimension_numbers<[1], [0], [0], [1], [0, 0, 1, 1], [], []>} : vector<8x32xf32>, vector<32x64xf32>, vector<8x64xf32> -> vector<8x64xf32>
    %c11 = arith.constant 11 : index
    %c0_63 = arith.constant 0 : index
    %133 = vector.load %arg3[%c11, %c0_63] : memref<20x128xf32, #tpu.memory_space<vmem>>, vector<1x64xf32>
    %134 = vector.broadcast %133 : vector<1x64xf32> to vector<8x64xf32>
    %135 = arith.addf %132, %134 : vector<8x64xf32>
    %cst_64 = arith.constant 0.000000e+00 : f32
    %136 = vector.broadcast %cst_64 : f32 to vector<8x64xf32>
    %137 = arith.subf %136, %135 : vector<8x64xf32>
    %138 = math.exp %137 : vector<8x64xf32>
    %cst_65 = arith.constant 1.000000e+00 : f32
    %139 = vector.broadcast %cst_65 : f32 to vector<8x64xf32>
    %140 = arith.addf %139, %138 : vector<8x64xf32>
    %141 = tpu.reciprocal %140 {approx = true} : vector<8x64xf32> -> vector<8x64xf32>
    %142 = arith.mulf %135, %141 : vector<8x64xf32>
    %c536 = arith.constant 536 : index
    %c0_66 = arith.constant 0 : index
    %143 = vector.load %arg2[%c536, %c0_66] : memref<920x128xf32, #tpu.memory_space<vmem>>, vector<64x32xf32>
    %cst_67 = arith.constant dense<0.000000e+00> : vector<8x32xf32>
    %144 = tpu.matmul %142, %143, %cst_67 {dimension_numbers = #tpu.dot_dimension_numbers<[1], [0], [0], [1], [0, 0, 1, 1], [], []>} : vector<8x64xf32>, vector<64x32xf32>, vector<8x32xf32> -> vector<8x32xf32>
    %145 = arith.addf %130, %144 : vector<8x32xf32>
    %c12 = arith.constant 12 : index
    %c0_68 = arith.constant 0 : index
    %146 = vector.load %arg3[%c12, %c0_68] : memref<20x128xf32, #tpu.memory_space<vmem>>, vector<1x32xf32>
    %147 = vector.broadcast %146 : vector<1x32xf32> to vector<8x32xf32>
    %148 = arith.addf %145, %147 : vector<8x32xf32>
    %cst_69 = arith.constant dense<0.000000e+00> : vector<112x32xf32>
    %149 = tpu.matmul %2, %148, %cst_69 {dimension_numbers = #tpu.dot_dimension_numbers<[1], [0], [0], [1], [0, 0, 1, 1], [], []>} : vector<112x8xf32>, vector<8x32xf32>, vector<112x32xf32> -> vector<112x32xf32>
    %150 = vector.extract_strided_slice %149 {offsets = [0, 0], sizes = [56, 32], strides = [1, 1]} : vector<112x32xf32> to vector<56x32xf32>
    %151 = vector.extract_strided_slice %149 {offsets = [56, 0], sizes = [56, 32], strides = [1, 1]} : vector<112x32xf32> to vector<56x32xf32>
    %152 = tpu.concatenate %150, %151, %128 in 1 : vector<56x32xf32>, vector<56x32xf32>, vector<56x32xf32> -> vector<56x96xf32>
    %c600 = arith.constant 600 : index
    %c0_70 = arith.constant 0 : index
    %153 = vector.load %arg2[%c600, %c0_70] : memref<920x128xf32, #tpu.memory_space<vmem>>, vector<96x32xf32>
    %cst_71 = arith.constant dense<0.000000e+00> : vector<56x32xf32>
    %154 = tpu.matmul %152, %153, %cst_71 {dimension_numbers = #tpu.dot_dimension_numbers<[1], [0], [0], [1], [0, 0, 1, 1], [], []>} : vector<56x96xf32>, vector<96x32xf32>, vector<56x32xf32> -> vector<56x32xf32>
    %c13 = arith.constant 13 : index
    %c0_72 = arith.constant 0 : index
    %155 = vector.load %arg3[%c13, %c0_72] : memref<20x128xf32, #tpu.memory_space<vmem>>, vector<1x32xf32>
    %156 = vector.broadcast %155 : vector<1x32xf32> to vector<56x32xf32>
    %157 = arith.addf %154, %156 : vector<56x32xf32>
    %cst_73 = arith.constant 0.000000e+00 : f32
    %158 = vector.broadcast %cst_73 : f32 to vector<56x32xf32>
    %159 = arith.subf %158, %157 : vector<56x32xf32>
    %160 = math.exp %159 : vector<56x32xf32>
    %cst_74 = arith.constant 1.000000e+00 : f32
    %161 = vector.broadcast %cst_74 : f32 to vector<56x32xf32>
    %162 = arith.addf %161, %160 : vector<56x32xf32>
    %163 = tpu.reciprocal %162 {approx = true} : vector<56x32xf32> -> vector<56x32xf32>
    %164 = arith.mulf %157, %163 : vector<56x32xf32>
    %c696 = arith.constant 696 : index
    %c0_75 = arith.constant 0 : index
    %165 = vector.load %arg2[%c696, %c0_75] : memref<920x128xf32, #tpu.memory_space<vmem>>, vector<32x32xf32>
    %cst_76 = arith.constant dense<0.000000e+00> : vector<56x32xf32>
    %166 = tpu.matmul %164, %165, %cst_76 {dimension_numbers = #tpu.dot_dimension_numbers<[1], [0], [0], [1], [0, 0, 1, 1], [], []>} : vector<56x32xf32>, vector<32x32xf32>, vector<56x32xf32> -> vector<56x32xf32>
    %c14 = arith.constant 14 : index
    %c0_77 = arith.constant 0 : index
    %167 = vector.load %arg3[%c14, %c0_77] : memref<20x128xf32, #tpu.memory_space<vmem>>, vector<1x32xf32>
    %168 = vector.broadcast %167 : vector<1x32xf32> to vector<56x32xf32>
    %169 = arith.addf %166, %168 : vector<56x32xf32>
    %cst_78 = arith.constant 0.000000e+00 : f32
    %170 = vector.broadcast %cst_78 : f32 to vector<56x32xf32>
    %171 = arith.subf %170, %169 : vector<56x32xf32>
    %172 = math.exp %171 : vector<56x32xf32>
    %cst_79 = arith.constant 1.000000e+00 : f32
    %173 = vector.broadcast %cst_79 : f32 to vector<56x32xf32>
    %174 = arith.addf %173, %172 : vector<56x32xf32>
    %175 = tpu.reciprocal %174 {approx = true} : vector<56x32xf32> -> vector<56x32xf32>
    %176 = arith.mulf %169, %175 : vector<56x32xf32>
    %cst_80 = arith.constant dense<0.000000e+00> : vector<8x32xf32>
    %177 = tpu.matmul %3, %176, %cst_80 {dimension_numbers = #tpu.dot_dimension_numbers<[1], [0], [0], [1], [0, 0, 1, 1], [], []>} : vector<8x56xf32>, vector<56x32xf32>, vector<8x32xf32> -> vector<8x32xf32>
    %178 = arith.addf %148, %177 : vector<8x32xf32>
    %c728 = arith.constant 728 : index
    %c0_81 = arith.constant 0 : index
    %179 = vector.load %arg2[%c728, %c0_81] : memref<920x128xf32, #tpu.memory_space<vmem>>, vector<32x64xf32>
    %cst_82 = arith.constant dense<0.000000e+00> : vector<8x64xf32>
    %180 = tpu.matmul %178, %179, %cst_82 {dimension_numbers = #tpu.dot_dimension_numbers<[1], [0], [0], [1], [0, 0, 1, 1], [], []>} : vector<8x32xf32>, vector<32x64xf32>, vector<8x64xf32> -> vector<8x64xf32>
    %c15 = arith.constant 15 : index
    %c0_83 = arith.constant 0 : index
    %181 = vector.load %arg3[%c15, %c0_83] : memref<20x128xf32, #tpu.memory_space<vmem>>, vector<1x64xf32>
    %182 = vector.broadcast %181 : vector<1x64xf32> to vector<8x64xf32>
    %183 = arith.addf %180, %182 : vector<8x64xf32>
    %cst_84 = arith.constant 0.000000e+00 : f32
    %184 = vector.broadcast %cst_84 : f32 to vector<8x64xf32>
    %185 = arith.subf %184, %183 : vector<8x64xf32>
    %186 = math.exp %185 : vector<8x64xf32>
    %cst_85 = arith.constant 1.000000e+00 : f32
    %187 = vector.broadcast %cst_85 : f32 to vector<8x64xf32>
    %188 = arith.addf %187, %186 : vector<8x64xf32>
    %189 = tpu.reciprocal %188 {approx = true} : vector<8x64xf32> -> vector<8x64xf32>
    %190 = arith.mulf %183, %189 : vector<8x64xf32>
    %c760 = arith.constant 760 : index
    %c0_86 = arith.constant 0 : index
    %191 = vector.load %arg2[%c760, %c0_86] : memref<920x128xf32, #tpu.memory_space<vmem>>, vector<64x32xf32>
    %cst_87 = arith.constant dense<0.000000e+00> : vector<8x32xf32>
    %192 = tpu.matmul %190, %191, %cst_87 {dimension_numbers = #tpu.dot_dimension_numbers<[1], [0], [0], [1], [0, 0, 1, 1], [], []>} : vector<8x64xf32>, vector<64x32xf32>, vector<8x32xf32> -> vector<8x32xf32>
    %193 = arith.addf %178, %192 : vector<8x32xf32>
    %c16_88 = arith.constant 16 : index
    %c0_89 = arith.constant 0 : index
    %194 = vector.load %arg3[%c16_88, %c0_89] : memref<20x128xf32, #tpu.memory_space<vmem>>, vector<1x32xf32>
    %195 = vector.broadcast %194 : vector<1x32xf32> to vector<8x32xf32>
    %196 = arith.addf %193, %195 : vector<8x32xf32>
    %c824 = arith.constant 824 : index
    %c0_90 = arith.constant 0 : index
    %197 = vector.load %arg2[%c824, %c0_90] : memref<920x128xf32, #tpu.memory_space<vmem>>, vector<32x32xf32>
    %cst_91 = arith.constant dense<0.000000e+00> : vector<8x32xf32>
    %198 = tpu.matmul %196, %197, %cst_91 {dimension_numbers = #tpu.dot_dimension_numbers<[1], [0], [0], [1], [0, 0, 1, 1], [], []>} : vector<8x32xf32>, vector<32x32xf32>, vector<8x32xf32> -> vector<8x32xf32>
    %c17 = arith.constant 17 : index
    %c0_92 = arith.constant 0 : index
    %199 = vector.load %arg3[%c17, %c0_92] : memref<20x128xf32, #tpu.memory_space<vmem>>, vector<1x32xf32>
    %200 = vector.broadcast %199 : vector<1x32xf32> to vector<8x32xf32>
    %201 = arith.addf %198, %200 : vector<8x32xf32>
    %cst_93 = arith.constant 0.000000e+00 : f32
    %202 = vector.broadcast %cst_93 : f32 to vector<8x32xf32>
    %203 = arith.subf %202, %201 : vector<8x32xf32>
    %204 = math.exp %203 : vector<8x32xf32>
    %cst_94 = arith.constant 1.000000e+00 : f32
    %205 = vector.broadcast %cst_94 : f32 to vector<8x32xf32>
    %206 = arith.addf %205, %204 : vector<8x32xf32>
    %207 = tpu.reciprocal %206 {approx = true} : vector<8x32xf32> -> vector<8x32xf32>
    %208 = arith.mulf %201, %207 : vector<8x32xf32>
    %c856 = arith.constant 856 : index
    %c0_95 = arith.constant 0 : index
    %209 = vector.load %arg2[%c856, %c0_95] : memref<920x128xf32, #tpu.memory_space<vmem>>, vector<32x32xf32>
    %cst_96 = arith.constant dense<0.000000e+00> : vector<8x32xf32>
    %210 = tpu.matmul %208, %209, %cst_96 {dimension_numbers = #tpu.dot_dimension_numbers<[1], [0], [0], [1], [0, 0, 1, 1], [], []>} : vector<8x32xf32>, vector<32x32xf32>, vector<8x32xf32> -> vector<8x32xf32>
    %c18 = arith.constant 18 : index
    %c0_97 = arith.constant 0 : index
    %211 = vector.load %arg3[%c18, %c0_97] : memref<20x128xf32, #tpu.memory_space<vmem>>, vector<1x32xf32>
    %212 = vector.broadcast %211 : vector<1x32xf32> to vector<8x32xf32>
    %213 = arith.addf %210, %212 : vector<8x32xf32>
    %cst_98 = arith.constant 0.000000e+00 : f32
    %214 = vector.broadcast %cst_98 : f32 to vector<8x32xf32>
    %215 = arith.subf %214, %213 : vector<8x32xf32>
    %216 = math.exp %215 : vector<8x32xf32>
    %cst_99 = arith.constant 1.000000e+00 : f32
    %217 = vector.broadcast %cst_99 : f32 to vector<8x32xf32>
    %218 = arith.addf %217, %216 : vector<8x32xf32>
    %219 = tpu.reciprocal %218 {approx = true} : vector<8x32xf32> -> vector<8x32xf32>
    %220 = arith.mulf %213, %219 : vector<8x32xf32>
    %c888 = arith.constant 888 : index
    %c0_100 = arith.constant 0 : index
    %221 = vector.load %arg2[%c888, %c0_100] : memref<920x128xf32, #tpu.memory_space<vmem>>, vector<32x128xf32>
    %cst_101 = arith.constant dense<0.000000e+00> : vector<8x128xf32>
    %222 = tpu.matmul %220, %221, %cst_101 {dimension_numbers = #tpu.dot_dimension_numbers<[1], [0], [0], [1], [0, 0, 1, 1], [], []>} : vector<8x32xf32>, vector<32x128xf32>, vector<8x128xf32> -> vector<8x128xf32>
    %c19 = arith.constant 19 : index
    %c0_102 = arith.constant 0 : index
    %223 = vector.load %arg3[%c19, %c0_102] : memref<20x128xf32, #tpu.memory_space<vmem>>, vector<1x128xf32>
    %224 = vector.broadcast %223 : vector<1x128xf32> to vector<8x128xf32>
    %225 = arith.addf %222, %224 : vector<8x128xf32>
    %c0_103 = arith.constant 0 : index
    %c0_104 = arith.constant 0 : index
    %226 = vector.load %arg4[%c0_103, %c0_104] : memref<8x128xf32, #tpu.memory_space<vmem>>, vector<8x128xf32>
    tpu.vector_store %arg4[%c0_103, %c0_104], %225 {strides = array<i32>} : memref<8x128xf32, #tpu.memory_space<vmem>>, vector<8x128xf32>,
    return
  }
}

</mosaic_0001>

<llo_original>
// kernel: forward.1
$region0: #{forward.1}
  #allocation0 [shape = 'u32[]', space=smem, size = 0x4, offset = 0x4, fixed_abs, tag = 'smem constant byte address 0x4 - core index']
  #allocation1 [shape = 'u32[72,128]{1,0:T(1,128)}', space=vmem, size = 0x9000, scoped, tag = 'internal scratch']
  %s0 = inlined_call_operand.vmem [shape: f32[64,128], index: 0, kind: input, shape index: {}]
  %s1 = inlined_call_operand.vmem [shape: f32[120,128], index: 1, kind: input, shape index: {}]
  %s2 = inlined_call_operand.vmem [shape: f32[920,128], index: 2, kind: input, shape index: {}]
  %s3 = inlined_call_operand.vmem [shape: f32[20,128], index: 3, kind: input, shape index: {}]
  %s4 = inlined_call_operand.vmem [shape: f32[8,128], index: 4, kind: output, shape index: {}]
  %s5 = sld [smem:[#allocation0]]
  $region26: #{forward.1} parent=0
    _
  %s7 = ssub.s32 1, %s5
  %s8 = scalar_select 0, %s7, %s5
  // Predicated region
  $region2: #{forward.1} parent=0 // pred_check
    _
  $region3: #{forward.1} parent=0 // pred_check_branch
    %10 = sbr.rel (0) target = $region5
  $region4: #{forward.1} parent=0 // pred_region
    _
  $region5: #{forward.1} parent=0 // pred_fallthru
    _
  // Predicated region
  $region6: #{forward.1} parent=0 // pred_check
    _
  $region7: #{forward.1} parent=0 // pred_check_branch
    %12 = sbr.rel (0) target = $region9
  $region8: #{forward.1} parent=0 // pred_region
    _
  $region9: #{forward.1} parent=0 // pred_fallthru
    _
  // Predicated region
  $region10: #{forward.1} parent=0 // pred_check
    _
  $region11: #{forward.1} parent=0 // pred_check_branch
    %14 = sbr.rel (0) target = $region13
  $region12: #{forward.1} parent=0 // pred_region
    _
  $region13: #{forward.1} parent=0 // pred_fallthru
    _
  // Predicated region
  $region14: #{forward.1} parent=0 // pred_check
    _
  $region15: #{forward.1} parent=0 // pred_check_branch
    %16 = sbr.rel (0) target = $region17
  $region16: #{forward.1} parent=0 // pred_region
    _
  $region17: #{forward.1} parent=0 // pred_fallthru
    _
  %v17 = vld [vmem:[%s0] sm:$0xff]
  %v18 = vld [vmem:[%s0 + $0x8] sm:$0xff]
  %v19 = vld [vmem:[%s0 + $0x10] sm:$0xff]
  %v20 = vld [vmem:[%s0 + $0x18] sm:$0xff]
  %v21 = vld [vmem:[%s0 + $0x20] sm:$0xff]
  %v22 = vld [vmem:[%s0 + $0x28] sm:$0xff]
  %v23 = vld [vmem:[%s0 + $0x30] sm:$0xff]
  %v24 = vld [vmem:[%s0 + $0x38] sm:$0xff]
  %v25 = vld [vmem:[%s1] sm:$0xff]
  %v26 = vld [vmem:[%s1 + $0x8] sm:$0xff]
  %v27 = vld [vmem:[%s1 + $0x10] sm:$0xff]
  %v28 = vld [vmem:[%s1 + $0x18] sm:$0xff]
  %v29 = vld [vmem:[%s1 + $0x20] sm:$0xff]
  %v30 = vld [vmem:[%s1 + $0x28] sm:$0xff]
  %v31 = vld [vmem:[%s1 + $0x30] sm:$0xff]
  %v32 = vld [vmem:[%s1 + $0x38] sm:$0xff]
  %v33 = vld [vmem:[%s1 + $0x40] sm:$0xff]
  %v34 = vld [vmem:[%s1 + $0x48] sm:$0xff]
  %v35 = vld [vmem:[%s1 + $0x50] sm:$0xff]
  %v36 = vld [vmem:[%s1 + $0x58] sm:$0xff]
  %v37 = vld [vmem:[%s1 + $0x60] sm:$0xff]
  %v38 = vld [vmem:[%s1 + $0x68] sm:$0xff]
  %v39 = vld [vmem:[%s1 + $0x70] sm:$0xff]
  %v40 = vld [vmem:[%s2] sm:$0xff]
  %v41 = vld [vmem:[%s2 + $0x8] sm:$0x1f]
  %v42 = vld [vmem:[%s3] sm:$0x1]
  %v43 = vperm.slane %v42, 0
  %vm44 = vcmask 105472
  %v46 = vsel %vm44, %v17, 0
  %v49 = vsel %vm44, %v18, 0
  %v52 = vsel %vm44, %v19, 0
  %v55 = vsel %vm44, %v20, 0
  %v58 = vsel %vm44, %v21, 0
  %v61 = vsel %vm44, %v22, 0
  %v64 = vsel %vm44, %v23, 0
  %vm66 = vcmask 1044480
  %v68 = vsel %vm66, %v41, 0
  %70 = vmatpush.msra.mxu0 0.0
  %71 = vmatpush.msra.mxu0 0.0
  %72 = vmatpush.msra.mxu0 0.0
  %73 = vmatpush.msra.mxu0 0.0
  %74 = vmatpush.msra.mxu0 0.0
  %75 = vmatpush.msra.mxu0 0.0
  %76 = vmatpush.msra.mxu0 0.0
  %77 = vmatpush.msra.mxu0 0.0
  %78 = vmatpush.msra.mxu0 0.0
  %79 = vmatpush.msra.mxu0 0.0
  %80 = vmatpush.msra.mxu0 0.0
  %81 = vmatpush.msra.mxu0 0.0
  %82 = vmatpush.msra.mxu0 0.0
  %83 = vmatpush.msra.mxu0 0.0
  %84 = vmatpush.msra.mxu0 %v68
  %85 = vmatpush.msra.mxu0 %v40
  %86 = vmatmul.f32.gmra.mxu0 %v46
  %v87 = vpop.f32.mrf.mxu0
  %v88 = vadd.f32 %v43, %v87
  %89 = vmatmul.f32.gmra.mxu0 %v49
  %v90 = vpop.f32.mrf.mxu0
  %v91 = vadd.f32 %v43, %v90
  %92 = vmatmul.f32.gmra.mxu0 %v52
  %v93 = vpop.f32.mrf.mxu0
  %v94 = vadd.f32 %v43, %v93
  %95 = vmatmul.f32.gmra.mxu0 %v55
  %v96 = vpop.f32.mrf.mxu0
  %v97 = vadd.f32 %v43, %v96
  %98 = vmatmul.f32.gmra.mxu0 %v58
  %v99 = vpop.f32.mrf.mxu0
  %v100 = vadd.f32 %v43, %v99
  %101 = vmatmul.f32.gmra.mxu0 %v61
  %v102 = vpop.f32.mrf.mxu0
  %v103 = vadd.f32 %v43, %v102
  %104 = vmatmul.f32.gmra.mxu0 %v64
  %v105 = vpop.f32.mrf.mxu0
  %v106 = vadd.f32 %v43, %v105
  %107 = vdwg.mxu0
  %v108 = vsub.f32 0.0, %v88
  %v109 = vsub.f32 0.0, %v91
  %v110 = vsub.f32 0.0, %v94
  %v111 = vsub.f32 0.0, %v97
  %v112 = vsub.f32 0.0, %v100
  %v113 = vsub.f32 0.0, %v103
  %v114 = vsub.f32 0.0, %v106
  %v115 = vmul.f32 %v108, 1.442695
  %v116 = vpow.pop %v115
  %v117 = vmul.f32 %v109, 1.442695
  %v118 = vpow.pop %v117
  %v119 = vmul.f32 %v110, 1.442695
  %v120 = vpow.pop %v119
  %v121 = vmul.f32 %v111, 1.442695
  %v122 = vpow.pop %v121
  %v123 = vmul.f32 %v112, 1.442695
  %v124 = vpow.pop %v123
  %v125 = vmul.f32 %v113, 1.442695
  %v126 = vpow.pop %v125
  %v127 = vmul.f32 %v114, 1.442695
  %v128 = vpow.pop %v127
  %v129 = vadd.f32 %v116, 1.0
  %v130 = vadd.f32 %v118, 1.0
  %v131 = vadd.f32 %v120, 1.0
  %v132 = vadd.f32 %v122, 1.0
  %v133 = vadd.f32 %v124, 1.0
  %v134 = vadd.f32 %v126, 1.0
  %v135 = vadd.f32 %v128, 1.0
  %v136 = vrcp.pop %v129
  %v137 = vrcp.pop %v130
  %v138 = vrcp.pop %v131
  %v139 = vrcp.pop %v132
  %v140 = vrcp.pop %v133
  %v141 = vrcp.pop %v134
  %v142 = vrcp.pop %v135
  %v143 = vmul.f32 %v88, %v136
  %v144 = vmul.f32 %v91, %v137
  %v145 = vmul.f32 %v94, %v138
  %v146 = vmul.f32 %v97, %v139
  %v147 = vmul.f32 %v100, %v140
  %v148 = vmul.f32 %v103, %v141
  %v149 = vmul.f32 %v106, %v142
  %v150 = vld [vmem:[%s2 + $0x10] sm:$0xff]
  %v151 = vld [vmem:[%s2 + $0x18] sm:$0xff]
  %v152 = vld [vmem:[%s2 + $0x20] sm:$0xff]
  %v153 = vld [vmem:[%s2 + $0x28] sm:$0xff]
  %v154 = vld [vmem:[%s3 + $0x1] sm:$0x1]
  %v155 = vperm.slane %v154, 0
  %vm156 = vcmask 261120
  %v158 = vsel %vm156, %v143, 0
  %v161 = vsel %vm156, %v144, 0
  %v164 = vsel %vm156, %v145, 0
  %v167 = vsel %vm156, %v146, 0
  %v170 = vsel %vm156, %v147, 0
  %v173 = vsel %vm156, %v148, 0
  %v176 = vsel %vm156, %v149, 0
  %178 = vmatpush.msra.mxu0 0.0
  %179 = vmatpush.msra.mxu0 0.0
  %180 = vmatpush.msra.mxu0 0.0
  %181 = vmatpush.msra.mxu0 0.0
  %182 = vmatpush.msra.mxu0 0.0
  %183 = vmatpush.msra.mxu0 0.0
  %184 = vmatpush.msra.mxu0 0.0
  %185 = vmatpush.msra.mxu0 0.0
  %186 = vmatpush.msra.mxu0 0.0
  %187 = vmatpush.msra.mxu0 0.0
  %188 = vmatpush.msra.mxu0 0.0
  %189 = vmatpush.msra.mxu0 0.0
  %190 = vmatpush.msra.mxu0 %v153
  %191 = vmatpush.msra.mxu0 %v152
  %192 = vmatpush.msra.mxu0 %v151
  %193 = vmatpush.msra.mxu0 %v150
  %194 = vmatmul.f32.gmra.mxu0 %v158
  %v195 = vpop.f32.mrf.mxu0
  %v196 = vadd.f32 %v155, %v195
  %197 = vmatmul.f32.gmra.mxu0 %v161
  %v198 = vpop.f32.mrf.mxu0
  %v199 = vadd.f32 %v155, %v198
  %200 = vmatmul.f32.gmra.mxu0 %v164
  %v201 = vpop.f32.mrf.mxu0
  %v202 = vadd.f32 %v155, %v201
  %203 = vmatmul.f32.gmra.mxu0 %v167
  %v204 = vpop.f32.mrf.mxu0
  %v205 = vadd.f32 %v155, %v204
  %206 = vmatmul.f32.gmra.mxu0 %v170
  %v207 = vpop.f32.mrf.mxu0
  %v208 = vadd.f32 %v155, %v207
  %209 = vmatmul.f32.gmra.mxu0 %v173
  %v210 = vpop.f32.mrf.mxu0
  %v211 = vadd.f32 %v155, %v210
  %212 = vmatmul.f32.gmra.mxu0 %v176
  %v213 = vpop.f32.mrf.mxu0
  %v214 = vadd.f32 %v155, %v213
  %215 = vdwg.mxu0
  %v216 = vsub.f32 0.0, %v196
  %v217 = vsub.f32 0.0, %v199
  %v218 = vsub.f32 0.0, %v202
  %v219 = vsub.f32 0.0, %v205
  %v220 = vsub.f32 0.0, %v208
  %v221 = vsub.f32 0.0, %v211
  %v222 = vsub.f32 0.0, %v214
  %v223 = vmul.f32 %v216, 1.442695
  %v224 = vpow.pop %v223
  %v225 = vmul.f32 %v217, 1.442695
  %v226 = vpow.pop %v225
  %v227 = vmul.f32 %v218, 1.442695
  %v228 = vpow.pop %v227
  %v229 = vmul.f32 %v219, 1.442695
  %v230 = vpow.pop %v229
  %v231 = vmul.f32 %v220, 1.442695
  %v232 = vpow.pop %v231
  %v233 = vmul.f32 %v221, 1.442695
  %v234 = vpow.pop %v233
  %v235 = vmul.f32 %v222, 1.442695
  %v236 = vpow.pop %v235
  %v237 = vadd.f32 %v224, 1.0
  %v238 = vadd.f32 %v226, 1.0
  %v239 = vadd.f32 %v228, 1.0
  %v240 = vadd.f32 %v230, 1.0
  %v241 = vadd.f32 %v232, 1.0
  %v242 = vadd.f32 %v234, 1.0
  %v243 = vadd.f32 %v236, 1.0
  %v244 = vrcp.pop %v237
  %v245 = vrcp.pop %v238
  %v246 = vrcp.pop %v239
  %v247 = vrcp.pop %v240
  %v248 = vrcp.pop %v241
  %v249 = vrcp.pop %v242
  %v250 = vrcp.pop %v243
  %v251 = vmul.f32 %v196, %v244
  %v252 = vmul.f32 %v199, %v245
  %v253 = vmul.f32 %v202, %v246
  %v254 = vmul.f32 %v205, %v247
  %v255 = vmul.f32 %v208, %v248
  %v256 = vmul.f32 %v211, %v249
  %v257 = vmul.f32 %v214, %v250
  %v258 = vld [vmem:[%s2 + $0x30] sm:$0xf]
  %v259 = vld [vmem:[%s3 + $0x2] sm:$0x1]
  %v260 = vperm.slane %v259, 0
  %vm261 = vcmask 31744
  %v263 = vsel %vm261, %v24, 0
  %vm265 = vcmask 1043456
  %v267 = vsel %vm265, %v258, 0
  %269 = vmatpush.msra.mxu0 0.0
  %270 = vmatpush.msra.mxu0 0.0
  %271 = vmatpush.msra.mxu0 0.0
  %272 = vmatpush.msra.mxu0 0.0
  %273 = vmatpush.msra.mxu0 0.0
  %274 = vmatpush.msra.mxu0 0.0
  %275 = vmatpush.msra.mxu0 0.0
  %276 = vmatpush.msra.mxu0 0.0
  %277 = vmatpush.msra.mxu0 0.0
  %278 = vmatpush.msra.mxu0 0.0
  %279 = vmatpush.msra.mxu0 0.0
  %280 = vmatpush.msra.mxu0 0.0
  %281 = vmatpush.msra.mxu0 0.0
  %282 = vmatpush.msra.mxu0 0.0
  %283 = vmatpush.msra.mxu0 0.0
  %284 = vmatpush.msra.mxu0 %v267
  %285 = vmatmul.f32.gmra.mxu0 %v263
  %v286 = vpop.f32.mrf.mxu0
  %v287 = vadd.f32 %v260, %v286
  %288 = vdwg.mxu0
  %vm289 = vcmask 457728
  %v291 = vsel %vm289, %v39, 0
  %293 = vmatpush.msra.mxu0 0.0
  %294 = vmatpush.msra.mxu0 0.0
  %295 = vmatpush.msra.mxu0 0.0
  %296 = vmatpush.msra.mxu0 0.0
  %297 = vmatpush.msra.mxu0 0.0
  %298 = vmatpush.msra.mxu0 0.0
  %299 = vmatpush.msra.mxu0 0.0
  %300 = vmatpush.msra.mxu0 0.0
  %301 = vmatpush.msra.mxu0 0.0
  %302 = vmatpush.msra.mxu0 %v257
  %303 = vmatpush.msra.mxu0 %v256
  %304 = vmatpush.msra.mxu0 %v255
  %305 = vmatpush.msra.mxu0 %v254
  %306 = vmatpush.msra.mxu0 %v253
  %307 = vmatpush.msra.mxu0 %v252
  %308 = vmatpush.msra.mxu0 %v251
  %309 = vmatmul.f32.gmra.mxu0 %v291
  %v310 = vpop.f32.mrf.mxu0
  %v311 = vadd.f32 0.0, %v310
  %312 = vdwg.mxu0
  %v313 = vadd.f32 %v287, %v311
  %v314 = vld [vmem:[%s2 + $0x38] sm:$0xff]
  %v315 = vld [vmem:[%s2 + $0x40] sm:$0xff]
  %v316 = vld [vmem:[%s2 + $0x48] sm:$0xff]
  %v317 = vld [vmem:[%s2 + $0x50] sm:$0xff]
  %v318 = vld [vmem:[%s3 + $0x3] sm:$0x1]
  %v319 = vperm.slane %v318, 0
  %v321 = vsel %vm156, %v313, 0
  %323 = vmatpush.msra.mxu0 0.0
  %324 = vmatpush.msra.mxu0 0.0
  %325 = vmatpush.msra.mxu0 0.0
  %326 = vmatpush.msra.mxu0 0.0
  %327 = vmatpush.msra.mxu0 0.0
  %328 = vmatpush.msra.mxu0 0.0
  %329 = vmatpush.msra.mxu0 0.0
  %330 = vmatpush.msra.mxu0 0.0
  %331 = vmatpush.msra.mxu0 0.0
  %332 = vmatpush.msra.mxu0 0.0
  %333 = vmatpush.msra.mxu0 0.0
  %334 = vmatpush.msra.mxu0 0.0
  %335 = vmatpush.msra.mxu0 %v317
  %336 = vmatpush.msra.mxu0 %v316
  %337 = vmatpush.msra.mxu0 %v315
  %338 = vmatpush.msra.mxu0 %v314
  %339 = vmatmul.f32.gmra.mxu0 %v321
  %v340 = vpop.f32.mrf.mxu0
  %v341 = vadd.f32 %v319, %v340
  %342 = vdwg.mxu0
  %v343 = vsub.f32 0.0, %v341
  %v344 = vmul.f32 %v343, 1.442695
  %v345 = vpow.pop %v344
  %v346 = vadd.f32 %v345, 1.0
  %v347 = vrcp.pop %v346
  %v348 = vmul.f32 %v341, %v347
  %v349 = vld [vmem:[%s2 + $0x58] sm:$0xff]
  %v350 = vld [vmem:[%s2 + $0x60] sm:$0xff]
  %v351 = vld [vmem:[%s2 + $0x68] sm:$0xff]
  %v352 = vld [vmem:[%s2 + $0x70] sm:$0xff]
  %v353 = vld [vmem:[%s2 + $0x78] sm:$0xff]
  %v354 = vld [vmem:[%s2 + $0x80] sm:$0xff]
  %v355 = vld [vmem:[%s2 + $0x88] sm:$0xff]
  %v356 = vld [vmem:[%s2 + $0x90] sm:$0xff]
  %vm357 = vcmask 523264
  %v359 = vsel %vm357, %v348, 0
  %361 = vmatpush.msra.mxu0 0.0
  %362 = vmatpush.msra.mxu0 0.0
  %363 = vmatpush.msra.mxu0 0.0
  %364 = vmatpush.msra.mxu0 0.0
  %365 = vmatpush.msra.mxu0 0.0
  %366 = vmatpush.msra.mxu0 0.0
  %367 = vmatpush.msra.mxu0 0.0
  %368 = vmatpush.msra.mxu0 0.0
  %369 = vmatpush.msra.mxu0 %v356
  %370 = vmatpush.msra.mxu0 %v355
  %371 = vmatpush.msra.mxu0 %v354
  %372 = vmatpush.msra.mxu0 %v353
  %373 = vmatpush.msra.mxu0 %v352
  %374 = vmatpush.msra.mxu0 %v351
  %375 = vmatpush.msra.mxu0 %v350
  %376 = vmatpush.msra.mxu0 %v349
  %377 = vmatmul.f32.gmra.mxu0 %v359
  %v378 = vpop.f32.mrf.mxu0
  %v379 = vadd.f32 0.0, %v378
  %380 = vdwg.mxu0
  %v381 = vadd.f32 %v313, %v379
  %v382 = vld [vmem:[%s3 + $0x4] sm:$0x1]
  %v383 = vperm.slane %v382, 0
  %v384 = vadd.f32 %v381, %v383
  %vm385 = vcmask 64512
  %v387 = vsel %vm385, %v25, 0
  %v390 = vsel %vm385, %v26, 0
  %v393 = vsel %vm385, %v27, 0
  %v396 = vsel %vm385, %v28, 0
  %v399 = vsel %vm385, %v29, 0
  %v402 = vsel %vm385, %v30, 0
  %v405 = vsel %vm385, %v31, 0
  %v408 = vsel %vm385, %v32, 0
  %v411 = vsel %vm385, %v33, 0
  %v414 = vsel %vm385, %v34, 0
  %v417 = vsel %vm385, %v35, 0
  %v420 = vsel %vm385, %v36, 0
  %v423 = vsel %vm385, %v37, 0
  %v426 = vsel %vm385, %v38, 0
  %428 = vmatpush.msra.mxu0 0.0
  %429 = vmatpush.msra.mxu0 0.0
  %430 = vmatpush.msra.mxu0 0.0
  %431 = vmatpush.msra.mxu0 0.0
  %432 = vmatpush.msra.mxu0 0.0
  %433 = vmatpush.msra.mxu0 0.0
  %434 = vmatpush.msra.mxu0 0.0
  %435 = vmatpush.msra.mxu0 0.0
  %436 = vmatpush.msra.mxu0 0.0
  %437 = vmatpush.msra.mxu0 0.0
  %438 = vmatpush.msra.mxu0 0.0
  %439 = vmatpush.msra.mxu0 0.0
  %440 = vmatpush.msra.mxu0 0.0
  %441 = vmatpush.msra.mxu0 0.0
  %442 = vmatpush.msra.mxu0 0.0
  %443 = vmatpush.msra.mxu0 %v384
  %444 = vmatmul.f32.gmra.mxu0 %v387
  %v445 = vpop.f32.mrf.mxu0
  %v446 = vadd.f32 0.0, %v445
  %447 = vmatmul.f32.gmra.mxu0 %v390
  %v448 = vpop.f32.mrf.mxu0
  %v449 = vadd.f32 0.0, %v448
  %450 = vmatmul.f32.gmra.mxu0 %v393
  %v451 = vpop.f32.mrf.mxu0
  %v452 = vadd.f32 0.0, %v451
  %453 = vmatmul.f32.gmra.mxu0 %v396
  %v454 = vpop.f32.mrf.mxu0
  %v455 = vadd.f32 0.0, %v454
  %456 = vmatmul.f32.gmra.mxu0 %v399
  %v457 = vpop.f32.mrf.mxu0
  %v458 = vadd.f32 0.0, %v457
  %459 = vmatmul.f32.gmra.mxu0 %v402
  %v460 = vpop.f32.mrf.mxu0
  %v461 = vadd.f32 0.0, %v460
  %462 = vmatmul.f32.gmra.mxu0 %v405
  %v463 = vpop.f32.mrf.mxu0
  %v464 = vadd.f32 0.0, %v463
  %465 = vmatmul.f32.gmra.mxu0 %v408
  %v466 = vpop.f32.mrf.mxu0
  %v467 = vadd.f32 0.0, %v466
  %468 = vmatmul.f32.gmra.mxu0 %v411
  %v469 = vpop.f32.mrf.mxu0
  %v470 = vadd.f32 0.0, %v469
  %471 = vmatmul.f32.gmra.mxu0 %v414
  %v472 = vpop.f32.mrf.mxu0
  %v473 = vadd.f32 0.0, %v472
  %474 = vmatmul.f32.gmra.mxu0 %v417
  %v475 = vpop.f32.mrf.mxu0
  %v476 = vadd.f32 0.0, %v475
  %477 = vmatmul.f32.gmra.mxu0 %v420
  %v478 = vpop.f32.mrf.mxu0
  %v479 = vadd.f32 0.0, %v478
  %480 = vmatmul.f32.gmra.mxu0 %v423
  %v481 = vpop.f32.mrf.mxu0
  %v482 = vadd.f32 0.0, %v481
  %483 = vmatmul.f32.gmra.mxu0 %v426
  %v484 = vpop.f32.mrf.mxu0
  %v485 = vadd.f32 0.0, %v484
  %486 = vdwg.mxu0
  %494 = vrot.lane.b32.xlu0 %v467, 32
  %v495 = vpop.permute.xlu0 %494
  %496 = vrot.lane.b32.xlu0 %v470, 32
  %v497 = vpop.permute.xlu0 %496
  %498 = vrot.lane.b32.xlu0 %v473, 32
  %v499 = vpop.permute.xlu0 %498
  %500 = vrot.lane.b32.xlu0 %v476, 32
  %v501 = vpop.permute.xlu0 %500
  %502 = vrot.lane.b32.xlu0 %v479, 32
  %v503 = vpop.permute.xlu0 %502
  %504 = vrot.lane.b32.xlu0 %v482, 32
  %v505 = vpop.permute.xlu0 %504
  %506 = vrot.lane.b32.xlu0 %v485, 32
  %v507 = vpop.permute.xlu0 %506
  %522 = vrot.lane.b32.xlu0 %v251, 64
  %v523 = vpop.permute.xlu0 %522
  %524 = vrot.lane.b32.xlu0 %v252, 64
  %v525 = vpop.permute.xlu0 %524
  %526 = vrot.lane.b32.xlu0 %v253, 64
  %v527 = vpop.permute.xlu0 %526
  %528 = vrot.lane.b32.xlu0 %v254, 64
  %v529 = vpop.permute.xlu0 %528
  %530 = vrot.lane.b32.xlu0 %v255, 64
  %v531 = vpop.permute.xlu0 %530
  %532 = vrot.lane.b32.xlu0 %v256, 64
  %v533 = vpop.permute.xlu0 %532
  %534 = vrot.lane.b32.xlu0 %v257, 64
  %v535 = vpop.permute.xlu0 %534
  %v543 = vsel %vm156, %v446, %v495
  %v544 = vsel %vm156, %v449, %v497
  %v545 = vsel %vm156, %v452, %v499
  %v546 = vsel %vm156, %v455, %v501
  %v547 = vsel %vm156, %v458, %v503
  %v548 = vsel %vm156, %v461, %v505
  %v549 = vsel %vm156, %v464, %v507
  %v550 = vsel %vm357, %v543, %v523
  %v551 = vsel %vm357, %v544, %v525
  %v552 = vsel %vm357, %v545, %v527
  %v553 = vsel %vm357, %v546, %v529
  %v554 = vsel %vm357, %v547, %v531
  %v555 = vsel %vm357, %v548, %v533
  %v556 = vsel %vm357, %v549, %v535
  %v557 = vld [vmem:[%s2 + $0x98] sm:$0xff]
  %v558 = vld [vmem:[%s2 + $0xa0] sm:$0xff]
  %v559 = vld [vmem:[%s2 + $0xa8] sm:$0xff]
  %v560 = vld [vmem:[%s2 + $0xb0] sm:$0xff]
  %v561 = vld [vmem:[%s2 + $0xb8] sm:$0xff]
  %v562 = vld [vmem:[%s2 + $0xc0] sm:$0xff]
  %v563 = vld [vmem:[%s2 + $0xc8] sm:$0xff]
  %v564 = vld [vmem:[%s2 + $0xd0] sm:$0xff]
  %v565 = vld [vmem:[%s2 + $0xd8] sm:$0xff]
  %v566 = vld [vmem:[%s2 + $0xe0] sm:$0xff]
  %v567 = vld [vmem:[%s2 + $0xe8] sm:$0xff]
  %v568 = vld [vmem:[%s2 + $0xf0] sm:$0xff]
  %v569 = vld [vmem:[%s3 + $0x5] sm:$0x1]
  %v570 = vperm.slane %v569, 0
  %vm571 = vcmask 785408
  %v573 = vsel %vm571, %v550, 0
  %v576 = vsel %vm571, %v551, 0
  %v579 = vsel %vm571, %v552, 0
  %v582 = vsel %vm571, %v553, 0
  %v585 = vsel %vm571, %v554, 0
  %v588 = vsel %vm571, %v555, 0
  %v591 = vsel %vm571, %v556, 0
  %593 = vmatpush.msra.mxu0 0.0
  %594 = vmatpush.msra.mxu0 0.0
  %595 = vmatpush.msra.mxu0 0.0
  %596 = vmatpush.msra.mxu0 0.0
  %597 = vmatpush.msra.mxu0 %v568
  %598 = vmatpush.msra.mxu0 %v567
  %599 = vmatpush.msra.mxu0 %v566
  %600 = vmatpush.msra.mxu0 %v565
  %601 = vmatpush.msra.mxu0 %v564
  %602 = vmatpush.msra.mxu0 %v563
  %603 = vmatpush.msra.mxu0 %v562
  %604 = vmatpush.msra.mxu0 %v561
  %605 = vmatpush.msra.mxu0 %v560
  %606 = vmatpush.msra.mxu0 %v559
  %607 = vmatpush.msra.mxu0 %v558
  %608 = vmatpush.msra.mxu0 %v557
  %609 = vmatmul.f32.gmra.mxu0 %v573
  %v610 = vpop.f32.mrf.mxu0
  %v611 = vadd.f32 %v570, %v610
  %612 = vmatmul.f32.gmra.mxu0 %v576
  %v613 = vpop.f32.mrf.mxu0
  %v614 = vadd.f32 %v570, %v613
  %615 = vmatmul.f32.gmra.mxu0 %v579
  %v616 = vpop.f32.mrf.mxu0
  %v617 = vadd.f32 %v570, %v616
  %618 = vmatmul.f32.gmra.mxu0 %v582
  %v619 = vpop.f32.mrf.mxu0
  %v620 = vadd.f32 %v570, %v619
  %621 = vmatmul.f32.gmra.mxu0 %v585
  %v622 = vpop.f32.mrf.mxu0
  %v623 = vadd.f32 %v570, %v622
  %624 = vmatmul.f32.gmra.mxu0 %v588
  %v625 = vpop.f32.mrf.mxu0
  %v626 = vadd.f32 %v570, %v625
  %627 = vmatmul.f32.gmra.mxu0 %v591
  %v628 = vpop.f32.mrf.mxu0
  %v629 = vadd.f32 %v570, %v628
  %630 = vdwg.mxu0
  %v631 = vsub.f32 0.0, %v611
  %v632 = vsub.f32 0.0, %v614
  %v633 = vsub.f32 0.0, %v617
  %v634 = vsub.f32 0.0, %v620
  %v635 = vsub.f32 0.0, %v623
  %v636 = vsub.f32 0.0, %v626
  %v637 = vsub.f32 0.0, %v629
  %v638 = vmul.f32 %v631, 1.442695
  %v639 = vpow.pop %v638
  %v640 = vmul.f32 %v632, 1.442695
  %v641 = vpow.pop %v640
  %v642 = vmul.f32 %v633, 1.442695
  %v643 = vpow.pop %v642
  %v644 = vmul.f32 %v634, 1.442695
  %v645 = vpow.pop %v644
  %v646 = vmul.f32 %v635, 1.442695
  %v647 = vpow.pop %v646
  %v648 = vmul.f32 %v636, 1.442695
  %v649 = vpow.pop %v648
  %v650 = vmul.f32 %v637, 1.442695
  %v651 = vpow.pop %v650
  %v652 = vadd.f32 %v639, 1.0
  %v653 = vadd.f32 %v641, 1.0
  %v654 = vadd.f32 %v643, 1.0
  %v655 = vadd.f32 %v645, 1.0
  %v656 = vadd.f32 %v647, 1.0
  %v657 = vadd.f32 %v649, 1.0
  %v658 = vadd.f32 %v651, 1.0
  %v659 = vrcp.pop %v652
  %v660 = vrcp.pop %v653
  %v661 = vrcp.pop %v654
  %v662 = vrcp.pop %v655
  %v663 = vrcp.pop %v656
  %v664 = vrcp.pop %v657
  %v665 = vrcp.pop %v658
  %v666 = vmul.f32 %v611, %v659
  %v667 = vmul.f32 %v614, %v660
  %v668 = vmul.f32 %v617, %v661
  %v669 = vmul.f32 %v620, %v662
  %v670 = vmul.f32 %v623, %v663
  %v671 = vmul.f32 %v626, %v664
  %v672 = vmul.f32 %v629, %v665
  %v673 = vld [vmem:[%s2 + $0xf8] sm:$0xff]
  %v674 = vld [vmem:[%s2 + $0x100] sm:$0xff]
  %v675 = vld [vmem:[%s2 + $0x108] sm:$0xff]
  %v676 = vld [vmem:[%s2 + $0x110] sm:$0xff]
  %v677 = vld [vmem:[%s3 + $0x6] sm:$0x1]
  %v678 = vperm.slane %v677, 0
  %v680 = vsel %vm156, %v666, 0
  %v683 = vsel %vm156, %v667, 0
  %v686 = vsel %vm156, %v668, 0
  %v689 = vsel %vm156, %v669, 0
  %v692 = vsel %vm156, %v670, 0
  %v695 = vsel %vm156, %v671, 0
  %v698 = vsel %vm156, %v672, 0
  %700 = vmatpush.msra.mxu0 0.0
  %701 = vmatpush.msra.mxu0 0.0
  %702 = vmatpush.msra.mxu0 0.0
  %703 = vmatpush.msra.mxu0 0.0
  %704 = vmatpush.msra.mxu0 0.0
  %705 = vmatpush.msra.mxu0 0.0
  %706 = vmatpush.msra.mxu0 0.0
  %707 = vmatpush.msra.mxu0 0.0
  %708 = vmatpush.msra.mxu0 0.0
  %709 = vmatpush.msra.mxu0 0.0
  %710 = vmatpush.msra.mxu0 0.0
  %711 = vmatpush.msra.mxu0 0.0
  %712 = vmatpush.msra.mxu0 %v676
  %713 = vmatpush.msra.mxu0 %v675
  %714 = vmatpush.msra.mxu0 %v674
  %715 = vmatpush.msra.mxu0 %v673
  %716 = vmatmul.f32.gmra.mxu0 %v680
  %v717 = vpop.f32.mrf.mxu0
  %v718 = vadd.f32 %v678, %v717
  %719 = vmatmul.f32.gmra.mxu0 %v683
  %v720 = vpop.f32.mrf.mxu0
  %v721 = vadd.f32 %v678, %v720
  %722 = vmatmul.f32.gmra.mxu0 %v686
  %v723 = vpop.f32.mrf.mxu0
  %v724 = vadd.f32 %v678, %v723
  %725 = vmatmul.f32.gmra.mxu0 %v689
  %v726 = vpop.f32.mrf.mxu0
  %v727 = vadd.f32 %v678, %v726
  %728 = vmatmul.f32.gmra.mxu0 %v692
  %v729 = vpop.f32.mrf.mxu0
  %v730 = vadd.f32 %v678, %v729
  %731 = vmatmul.f32.gmra.mxu0 %v695
  %v732 = vpop.f32.mrf.mxu0
  %v733 = vadd.f32 %v678, %v732
  %734 = vmatmul.f32.gmra.mxu0 %v698
  %v735 = vpop.f32.mrf.mxu0
  %v736 = vadd.f32 %v678, %v735
  %737 = vdwg.mxu0
  %v738 = vsub.f32 0.0, %v718
  %v739 = vsub.f32 0.0, %v721
  %v740 = vsub.f32 0.0, %v724
  %v741 = vsub.f32 0.0, %v727
  %v742 = vsub.f32 0.0, %v730
  %v743 = vsub.f32 0.0, %v733
  %v744 = vsub.f32 0.0, %v736
  %v745 = vmul.f32 %v738, 1.442695
  %v746 = vpow.pop %v745
  %v747 = vmul.f32 %v739, 1.442695
  %v748 = vpow.pop %v747
  %v749 = vmul.f32 %v740, 1.442695
  %v750 = vpow.pop %v749
  %v751 = vmul.f32 %v741, 1.442695
  %v752 = vpow.pop %v751
  %v753 = vmul.f32 %v742, 1.442695
  %v754 = vpow.pop %v753
  %v755 = vmul.f32 %v743, 1.442695
  %v756 = vpow.pop %v755
  %v757 = vmul.f32 %v744, 1.442695
  %v758 = vpow.pop %v757
  %v759 = vadd.f32 %v746, 1.0
  %v760 = vadd.f32 %v748, 1.0
  %v761 = vadd.f32 %v750, 1.0
  %v762 = vadd.f32 %v752, 1.0
  %v763 = vadd.f32 %v754, 1.0
  %v764 = vadd.f32 %v756, 1.0
  %v765 = vadd.f32 %v758, 1.0
  %v766 = vrcp.pop %v759
  %v767 = vrcp.pop %v760
  %v768 = vrcp.pop %v761
  %v769 = vrcp.pop %v762
  %v770 = vrcp.pop %v763
  %v771 = vrcp.pop %v764
  %v772 = vrcp.pop %v765
  %v773 = vmul.f32 %v718, %v766
  %v774 = vmul.f32 %v721, %v767
  %v775 = vmul.f32 %v724, %v768
  %v776 = vmul.f32 %v727, %v769
  %v777 = vmul.f32 %v730, %v770
  %v778 = vmul.f32 %v733, %v771
  %v779 = vmul.f32 %v736, %v772
  %780 = vmatpush.msra.mxu0 0.0
  %781 = vmatpush.msra.mxu0 0.0
  %782 = vmatpush.msra.mxu0 0.0
  %783 = vmatpush.msra.mxu0 0.0
  %784 = vmatpush.msra.mxu0 0.0
  %785 = vmatpush.msra.mxu0 0.0
  %786 = vmatpush.msra.mxu0 0.0
  %787 = vmatpush.msra.mxu0 0.0
  %788 = vmatpush.msra.mxu0 0.0
  %789 = vmatpush.msra.mxu0 %v779
  %790 = vmatpush.msra.mxu0 %v778
  %791 = vmatpush.msra.mxu0 %v777
  %792 = vmatpush.msra.mxu0 %v776
  %793 = vmatpush.msra.mxu0 %v775
  %794 = vmatpush.msra.mxu0 %v774
  %795 = vmatpush.msra.mxu0 %v773
  %796 = vmatmul.f32.gmra.mxu0 %v291
  %v797 = vpop.f32.mrf.mxu0
  %v798 = vadd.f32 0.0, %v797
  %799 = vdwg.mxu0
  %v800 = vadd.f32 %v384, %v798
  %v801 = vld [vmem:[%s2 + $0x118] sm:$0xff]
  %v802 = vld [vmem:[%s2 + $0x120] sm:$0xff]
  %v803 = vld [vmem:[%s2 + $0x128] sm:$0xff]
  %v804 = vld [vmem:[%s2 + $0x130] sm:$0xff]
  %v805 = vld [vmem:[%s3 + $0x7] sm:$0x1]
  %v806 = vperm.slane %v805, 0
  %v808 = vsel %vm156, %v800, 0
  %810 = vmatpush.msra.mxu0 0.0
  %811 = vmatpush.msra.mxu0 0.0
  %812 = vmatpush.msra.mxu0 0.0
  %813 = vmatpush.msra.mxu0 0.0
  %814 = vmatpush.msra.mxu0 0.0
  %815 = vmatpush.msra.mxu0 0.0
  %816 = vmatpush.msra.mxu0 0.0
  %817 = vmatpush.msra.mxu0 0.0
  %818 = vmatpush.msra.mxu0 0.0
  %819 = vmatpush.msra.mxu0 0.0
  %820 = vmatpush.msra.mxu0 0.0
  %821 = vmatpush.msra.mxu0 0.0
  %822 = vmatpush.msra.mxu0 %v804
  %823 = vmatpush.msra.mxu0 %v803
  %824 = vmatpush.msra.mxu0 %v802
  %825 = vmatpush.msra.mxu0 %v801
  %826 = vmatmul.f32.gmra.mxu0 %v808
  %v827 = vpop.f32.mrf.mxu0
  %v828 = vadd.f32 %v806, %v827
  %829 = vdwg.mxu0
  %v830 = vsub.f32 0.0, %v828
  %v831 = vmul.f32 %v830, 1.442695
  %v832 = vpow.pop %v831
  %v833 = vadd.f32 %v832, 1.0
  %v834 = vrcp.pop %v833
  %v835 = vmul.f32 %v828, %v834
  %v836 = vld [vmem:[%s2 + $0x138] sm:$0xff]
  %v837 = vld [vmem:[%s2 + $0x140] sm:$0xff]
  %v838 = vld [vmem:[%s2 + $0x148] sm:$0xff]
  %v839 = vld [vmem:[%s2 + $0x150] sm:$0xff]
  %v840 = vld [vmem:[%s2 + $0x158] sm:$0xff]
  %v841 = vld [vmem:[%s2 + $0x160] sm:$0xff]
  %v842 = vld [vmem:[%s2 + $0x168] sm:$0xff]
  %v843 = vld [vmem:[%s2 + $0x170] sm:$0xff]
  %v845 = vsel %vm357, %v835, 0
  %847 = vmatpush.msra.mxu0 0.0
  %848 = vmatpush.msra.mxu0 0.0
  %849 = vmatpush.msra.mxu0 0.0
  %850 = vmatpush.msra.mxu0 0.0
  %851 = vmatpush.msra.mxu0 0.0
  %852 = vmatpush.msra.mxu0 0.0
  %853 = vmatpush.msra.mxu0 0.0
  %854 = vmatpush.msra.mxu0 0.0
  %855 = vmatpush.msra.mxu0 %v843
  %856 = vmatpush.msra.mxu0 %v842
  %857 = vmatpush.msra.mxu0 %v841
  %858 = vmatpush.msra.mxu0 %v840
  %859 = vmatpush.msra.mxu0 %v839
  %860 = vmatpush.msra.mxu0 %v838
  %861 = vmatpush.msra.mxu0 %v837
  %862 = vmatpush.msra.mxu0 %v836
  %863 = vmatmul.f32.gmra.mxu0 %v845
  %v864 = vpop.f32.mrf.mxu0
  %v865 = vadd.f32 0.0, %v864
  %866 = vdwg.mxu0
  %v867 = vadd.f32 %v800, %v865
  %v868 = vld [vmem:[%s3 + $0x8] sm:$0x1]
  %v869 = vperm.slane %v868, 0
  %v870 = vadd.f32 %v867, %v869
  %871 = vmatpush.msra.mxu0 0.0
  %872 = vmatpush.msra.mxu0 0.0
  %873 = vmatpush.msra.mxu0 0.0
  %874 = vmatpush.msra.mxu0 0.0
  %875 = vmatpush.msra.mxu0 0.0
  %876 = vmatpush.msra.mxu0 0.0
  %877 = vmatpush.msra.mxu0 0.0
  %878 = vmatpush.msra.mxu0 0.0
  %879 = vmatpush.msra.mxu0 0.0
  %880 = vmatpush.msra.mxu0 0.0
  %881 = vmatpush.msra.mxu0 0.0
  %882 = vmatpush.msra.mxu0 0.0
  %883 = vmatpush.msra.mxu0 0.0
  %884 = vmatpush.msra.mxu0 0.0
  %885 = vmatpush.msra.mxu0 0.0
  %886 = vmatpush.msra.mxu0 %v870
  %887 = vmatmul.f32.gmra.mxu0 %v387
  %v888 = vpop.f32.mrf.mxu0
  %v889 = vadd.f32 0.0, %v888
  %890 = vmatmul.f32.gmra.mxu0 %v390
  %v891 = vpop.f32.mrf.mxu0
  %v892 = vadd.f32 0.0, %v891
  %893 = vmatmul.f32.gmra.mxu0 %v393
  %v894 = vpop.f32.mrf.mxu0
  %v895 = vadd.f32 0.0, %v894
  %896 = vmatmul.f32.gmra.mxu0 %v396
  %v897 = vpop.f32.mrf.mxu0
  %v898 = vadd.f32 0.0, %v897
  %899 = vmatmul.f32.gmra.mxu0 %v399
  %v900 = vpop.f32.mrf.mxu0
  %v901 = vadd.f32 0.0, %v900
  %902 = vmatmul.f32.gmra.mxu0 %v402
  %v903 = vpop.f32.mrf.mxu0
  %v904 = vadd.f32 0.0, %v903
  %905 = vmatmul.f32.gmra.mxu0 %v405
  %v906 = vpop.f32.mrf.mxu0
  %v907 = vadd.f32 0.0, %v906
  %908 = vmatmul.f32.gmra.mxu0 %v408
  %v909 = vpop.f32.mrf.mxu0
  %v910 = vadd.f32 0.0, %v909
  %911 = vmatmul.f32.gmra.mxu0 %v411
  %v912 = vpop.f32.mrf.mxu0
  %v913 = vadd.f32 0.0, %v912
  %914 = vmatmul.f32.gmra.mxu0 %v414
  %v915 = vpop.f32.mrf.mxu0
  %v916 = vadd.f32 0.0, %v915
  %917 = vmatmul.f32.gmra.mxu0 %v417
  %v918 = vpop.f32.mrf.mxu0
  %v919 = vadd.f32 0.0, %v918
  %920 = vmatmul.f32.gmra.mxu0 %v420
  %v921 = vpop.f32.mrf.mxu0
  %v922 = vadd.f32 0.0, %v921
  %923 = vmatmul.f32.gmra.mxu0 %v423
  %v924 = vpop.f32.mrf.mxu0
  %v925 = vadd.f32 0.0, %v924
  %926 = vmatmul.f32.gmra.mxu0 %v426
  %v927 = vpop.f32.mrf.mxu0
  %v928 = vadd.f32 0.0, %v927
  %929 = vdwg.mxu0
  %937 = vrot.lane.b32.xlu0 %v910, 32
  %v938 = vpop.permute.xlu0 %937
  %939 = vrot.lane.b32.xlu0 %v913, 32
  %v940 = vpop.permute.xlu0 %939
  %941 = vrot.lane.b32.xlu0 %v916, 32
  %v942 = vpop.permute.xlu0 %941
  %943 = vrot.lane.b32.xlu0 %v919, 32
  %v944 = vpop.permute.xlu0 %943
  %945 = vrot.lane.b32.xlu0 %v922, 32
  %v946 = vpop.permute.xlu0 %945
  %947 = vrot.lane.b32.xlu0 %v925, 32
  %v948 = vpop.permute.xlu0 %947
  %949 = vrot.lane.b32.xlu0 %v928, 32
  %v950 = vpop.permute.xlu0 %949
  %965 = vrot.lane.b32.xlu0 %v773, 64
  %v966 = vpop.permute.xlu0 %965
  %967 = vrot.lane.b32.xlu0 %v774, 64
  %v968 = vpop.permute.xlu0 %967
  %969 = vrot.lane.b32.xlu0 %v775, 64
  %v970 = vpop.permute.xlu0 %969
  %971 = vrot.lane.b32.xlu0 %v776, 64
  %v972 = vpop.permute.xlu0 %971
  %973 = vrot.lane.b32.xlu0 %v777, 64
  %v974 = vpop.permute.xlu0 %973
  %975 = vrot.lane.b32.xlu0 %v778, 64
  %v976 = vpop.permute.xlu0 %975
  %977 = vrot.lane.b32.xlu0 %v779, 64
  %v978 = vpop.permute.xlu0 %977
  %v986 = vsel %vm156, %v889, %v938
  %v987 = vsel %vm156, %v892, %v940
  %v988 = vsel %vm156, %v895, %v942
  %v989 = vsel %vm156, %v898, %v944
  %v990 = vsel %vm156, %v901, %v946
  %v991 = vsel %vm156, %v904, %v948
  %v992 = vsel %vm156, %v907, %v950
  %v993 = vsel %vm357, %v986, %v966
  %v994 = vsel %vm357, %v987, %v968
  %v995 = vsel %vm357, %v988, %v970
  %v996 = vsel %vm357, %v989, %v972
  %v997 = vsel %vm357, %v990, %v974
  %v998 = vsel %vm357, %v991, %v976
  %v999 = vsel %vm357, %v992, %v978
  %v1000 = vld [vmem:[%s2 + $0x178] sm:$0xff]
  %v1001 = vld [vmem:[%s2 + $0x180] sm:$0xff]
  %v1002 = vld [vmem:[%s2 + $0x188] sm:$0xff]
  %v1003 = vld [vmem:[%s2 + $0x190] sm:$0xff]
  %v1004 = vld [vmem:[%s2 + $0x198] sm:$0xff]
  %v1005 = vld [vmem:[%s2 + $0x1a0] sm:$0xff]
  %v1006 = vld [vmem:[%s2 + $0x1a8] sm:$0xff]
  %v1007 = vld [vmem:[%s2 + $0x1b0] sm:$0xff]
  %v1008 = vld [vmem:[%s2 + $0x1b8] sm:$0xff]
  %v1009 = vld [vmem:[%s2 + $0x1c0] sm:$0xff]
  %v1010 = vld [vmem:[%s2 + $0x1c8] sm:$0xff]
  %v1011 = vld [vmem:[%s2 + $0x1d0] sm:$0xff]
  %v1012 = vld [vmem:[%s3 + $0x9] sm:$0x1]
  %v1013 = vperm.slane %v1012, 0
  %v1015 = vsel %vm571, %v993, 0
  %v1018 = vsel %vm571, %v994, 0
  %v1021 = vsel %vm571, %v995, 0
  %v1024 = vsel %vm571, %v996, 0
  %v1027 = vsel %vm571, %v997, 0
  %v1030 = vsel %vm571, %v998, 0
  %v1033 = vsel %vm571, %v999, 0
  %1035 = vmatpush.msra.mxu0 0.0
  %1036 = vmatpush.msra.mxu0 0.0
  %1037 = vmatpush.msra.mxu0 0.0
  %1038 = vmatpush.msra.mxu0 0.0
  %1039 = vmatpush.msra.mxu0 %v1011
  %1040 = vmatpush.msra.mxu0 %v1010
  %1041 = vmatpush.msra.mxu0 %v1009
  %1042 = vmatpush.msra.mxu0 %v1008
  %1043 = vmatpush.msra.mxu0 %v1007
  %1044 = vmatpush.msra.mxu0 %v1006
  %1045 = vmatpush.msra.mxu0 %v1005
  %1046 = vmatpush.msra.mxu0 %v1004
  %1047 = vmatpush.msra.mxu0 %v1003
  %1048 = vmatpush.msra.mxu0 %v1002
  %1049 = vmatpush.msra.mxu0 %v1001
  %1050 = vmatpush.msra.mxu0 %v1000
  %1051 = vmatmul.f32.gmra.mxu0 %v1015
  %v1052 = vpop.f32.mrf.mxu0
  %v1053 = vadd.f32 %v1013, %v1052
  %1054 = vmatmul.f32.gmra.mxu0 %v1018
  %v1055 = vpop.f32.mrf.mxu0
  %v1056 = vadd.f32 %v1013, %v1055
  %1057 = vmatmul.f32.gmra.mxu0 %v1021
  %v1058 = vpop.f32.mrf.mxu0
  %v1059 = vadd.f32 %v1013, %v1058
  %1060 = vmatmul.f32.gmra.mxu0 %v1024
  %v1061 = vpop.f32.mrf.mxu0
  %v1062 = vadd.f32 %v1013, %v1061
  %1063 = vmatmul.f32.gmra.mxu0 %v1027
  %v1064 = vpop.f32.mrf.mxu0
  %v1065 = vadd.f32 %v1013, %v1064
  %1066 = vmatmul.f32.gmra.mxu0 %v1030
  %v1067 = vpop.f32.mrf.mxu0
  %v1068 = vadd.f32 %v1013, %v1067
  %1069 = vmatmul.f32.gmra.mxu0 %v1033
  %v1070 = vpop.f32.mrf.mxu0
  %v1071 = vadd.f32 %v1013, %v1070
  %1072 = vdwg.mxu0
  %v1073 = vsub.f32 0.0, %v1053
  %v1074 = vsub.f32 0.0, %v1056
  %v1075 = vsub.f32 0.0, %v1059
  %v1076 = vsub.f32 0.0, %v1062
  %v1077 = vsub.f32 0.0, %v1065
  %v1078 = vsub.f32 0.0, %v1068
  %v1079 = vsub.f32 0.0, %v1071
  %v1080 = vmul.f32 %v1073, 1.442695
  %v1081 = vpow.pop %v1080
  %v1082 = vmul.f32 %v1074, 1.442695
  %v1083 = vpow.pop %v1082
  %v1084 = vmul.f32 %v1075, 1.442695
  %v1085 = vpow.pop %v1084
  %v1086 = vmul.f32 %v1076, 1.442695
  %v1087 = vpow.pop %v1086
  %v1088 = vmul.f32 %v1077, 1.442695
  %v1089 = vpow.pop %v1088
  %v1090 = vmul.f32 %v1078, 1.442695
  %v1091 = vpow.pop %v1090
  %v1092 = vmul.f32 %v1079, 1.442695
  %v1093 = vpow.pop %v1092
  %v1094 = vadd.f32 %v1081, 1.0
  %v1095 = vadd.f32 %v1083, 1.0
  %v1096 = vadd.f32 %v1085, 1.0
  %v1097 = vadd.f32 %v1087, 1.0
  %v1098 = vadd.f32 %v1089, 1.0
  %v1099 = vadd.f32 %v1091, 1.0
  %v1100 = vadd.f32 %v1093, 1.0
  %v1101 = vrcp.pop %v1094
  %v1102 = vrcp.pop %v1095
  %v1103 = vrcp.pop %v1096
  %v1104 = vrcp.pop %v1097
  %v1105 = vrcp.pop %v1098
  %v1106 = vrcp.pop %v1099
  %v1107 = vrcp.pop %v1100
  %v1108 = vmul.f32 %v1053, %v1101
  %v1109 = vmul.f32 %v1056, %v1102
  %v1110 = vmul.f32 %v1059, %v1103
  %v1111 = vmul.f32 %v1062, %v1104
  %v1112 = vmul.f32 %v1065, %v1105
  %v1113 = vmul.f32 %v1068, %v1106
  %v1114 = vmul.f32 %v1071, %v1107
  %v1115 = vld [vmem:[%s2 + $0x1d8] sm:$0xff]
  %v1116 = vld [vmem:[%s2 + $0x1e0] sm:$0xff]
  %v1117 = vld [vmem:[%s2 + $0x1e8] sm:$0xff]
  %v1118 = vld [vmem:[%s2 + $0x1f0] sm:$0xff]
  %v1119 = vld [vmem:[%s3 + $0xa] sm:$0x1]
  %v1120 = vperm.slane %v1119, 0
  %v1122 = vsel %vm156, %v1108, 0
  %v1125 = vsel %vm156, %v1109, 0
  %v1128 = vsel %vm156, %v1110, 0
  %v1131 = vsel %vm156, %v1111, 0
  %v1134 = vsel %vm156, %v1112, 0
  %v1137 = vsel %vm156, %v1113, 0
  %v1140 = vsel %vm156, %v1114, 0
  %1142 = vmatpush.msra.mxu0 0.0
  %1143 = vmatpush.msra.mxu0 0.0
  %1144 = vmatpush.msra.mxu0 0.0
  %1145 = vmatpush.msra.mxu0 0.0
  %1146 = vmatpush.msra.mxu0 0.0
  %1147 = vmatpush.msra.mxu0 0.0
  %1148 = vmatpush.msra.mxu0 0.0
  %1149 = vmatpush.msra.mxu0 0.0
  %1150 = vmatpush.msra.mxu0 0.0
  %1151 = vmatpush.msra.mxu0 0.0
  %1152 = vmatpush.msra.mxu0 0.0
  %1153 = vmatpush.msra.mxu0 0.0
  %1154 = vmatpush.msra.mxu0 %v1118
  %1155 = vmatpush.msra.mxu0 %v1117
  %1156 = vmatpush.msra.mxu0 %v1116
  %1157 = vmatpush.msra.mxu0 %v1115
  %1158 = vmatmul.f32.gmra.mxu0 %v1122
  %v1159 = vpop.f32.mrf.mxu0
  %v1160 = vadd.f32 %v1120, %v1159
  %1161 = vmatmul.f32.gmra.mxu0 %v1125
  %v1162 = vpop.f32.mrf.mxu0
  %v1163 = vadd.f32 %v1120, %v1162
  %1164 = vmatmul.f32.gmra.mxu0 %v1128
  %v1165 = vpop.f32.mrf.mxu0
  %v1166 = vadd.f32 %v1120, %v1165
  %1167 = vmatmul.f32.gmra.mxu0 %v1131
  %v1168 = vpop.f32.mrf.mxu0
  %v1169 = vadd.f32 %v1120, %v1168
  %1170 = vmatmul.f32.gmra.mxu0 %v1134
  %v1171 = vpop.f32.mrf.mxu0
  %v1172 = vadd.f32 %v1120, %v1171
  %1173 = vmatmul.f32.gmra.mxu0 %v1137
  %v1174 = vpop.f32.mrf.mxu0
  %v1175 = vadd.f32 %v1120, %v1174
  %1176 = vmatmul.f32.gmra.mxu0 %v1140
  %v1177 = vpop.f32.mrf.mxu0
  %v1178 = vadd.f32 %v1120, %v1177
  %1179 = vdwg.mxu0
  %v1180 = vsub.f32 0.0, %v1160
  %v1181 = vsub.f32 0.0, %v1163
  %v1182 = vsub.f32 0.0, %v1166
  %v1183 = vsub.f32 0.0, %v1169
  %v1184 = vsub.f32 0.0, %v1172
  %v1185 = vsub.f32 0.0, %v1175
  %v1186 = vsub.f32 0.0, %v1178
  %v1187 = vmul.f32 %v1180, 1.442695
  %v1188 = vpow.pop %v1187
  %v1189 = vmul.f32 %v1181, 1.442695
  %v1190 = vpow.pop %v1189
  %v1191 = vmul.f32 %v1182, 1.442695
  %v1192 = vpow.pop %v1191
  %v1193 = vmul.f32 %v1183, 1.442695
  %v1194 = vpow.pop %v1193
  %v1195 = vmul.f32 %v1184, 1.442695
  %v1196 = vpow.pop %v1195
  %v1197 = vmul.f32 %v1185, 1.442695
  %v1198 = vpow.pop %v1197
  %v1199 = vmul.f32 %v1186, 1.442695
  %v1200 = vpow.pop %v1199
  %v1201 = vadd.f32 %v1188, 1.0
  %v1202 = vadd.f32 %v1190, 1.0
  %v1203 = vadd.f32 %v1192, 1.0
  %v1204 = vadd.f32 %v1194, 1.0
  %v1205 = vadd.f32 %v1196, 1.0
  %v1206 = vadd.f32 %v1198, 1.0
  %v1207 = vadd.f32 %v1200, 1.0
  %v1208 = vrcp.pop %v1201
  %v1209 = vrcp.pop %v1202
  %v1210 = vrcp.pop %v1203
  %v1211 = vrcp.pop %v1204
  %v1212 = vrcp.pop %v1205
  %v1213 = vrcp.pop %v1206
  %v1214 = vrcp.pop %v1207
  %v1215 = vmul.f32 %v1160, %v1208
  %v1216 = vmul.f32 %v1163, %v1209
  %v1217 = vmul.f32 %v1166, %v1210
  %v1218 = vmul.f32 %v1169, %v1211
  %v1219 = vmul.f32 %v1172, %v1212
  %v1220 = vmul.f32 %v1175, %v1213
  %v1221 = vmul.f32 %v1178, %v1214
  %1222 = vmatpush.msra.mxu0 0.0
  %1223 = vmatpush.msra.mxu0 0.0
  %1224 = vmatpush.msra.mxu0 0.0
  %1225 = vmatpush.msra.mxu0 0.0
  %1226 = vmatpush.msra.mxu0 0.0
  %1227 = vmatpush.msra.mxu0 0.0
  %1228 = vmatpush.msra.mxu0 0.0
  %1229 = vmatpush.msra.mxu0 0.0
  %1230 = vmatpush.msra.mxu0 0.0
  %1231 = vmatpush.msra.mxu0 %v1221
  %1232 = vmatpush.msra.mxu0 %v1220
  %1233 = vmatpush.msra.mxu0 %v1219
  %1234 = vmatpush.msra.mxu0 %v1218
  %1235 = vmatpush.msra.mxu0 %v1217
  %1236 = vmatpush.msra.mxu0 %v1216
  %1237 = vmatpush.msra.mxu0 %v1215
  %1238 = vmatmul.f32.gmra.mxu0 %v291
  %v1239 = vpop.f32.mrf.mxu0
  %v1240 = vadd.f32 0.0, %v1239
  %1241 = vdwg.mxu0
  %v1242 = vadd.f32 %v870, %v1240
  %v1243 = vld [vmem:[%s2 + $0x1f8] sm:$0xff]
  %v1244 = vld [vmem:[%s2 + $0x200] sm:$0xff]
  %v1245 = vld [vmem:[%s2 + $0x208] sm:$0xff]
  %v1246 = vld [vmem:[%s2 + $0x210] sm:$0xff]
  %v1247 = vld [vmem:[%s3 + $0xb] sm:$0x1]
  %v1248 = vperm.slane %v1247, 0
  %v1250 = vsel %vm156, %v1242, 0
  %1252 = vmatpush.msra.mxu0 0.0
  %1253 = vmatpush.msra.mxu0 0.0
  %1254 = vmatpush.msra.mxu0 0.0
  %1255 = vmatpush.msra.mxu0 0.0
  %1256 = vmatpush.msra.mxu0 0.0
  %1257 = vmatpush.msra.mxu0 0.0
  %1258 = vmatpush.msra.mxu0 0.0
  %1259 = vmatpush.msra.mxu0 0.0
  %1260 = vmatpush.msra.mxu0 0.0
  %1261 = vmatpush.msra.mxu0 0.0
  %1262 = vmatpush.msra.mxu0 0.0
  %1263 = vmatpush.msra.mxu0 0.0
  %1264 = vmatpush.msra.mxu0 %v1246
  %1265 = vmatpush.msra.mxu0 %v1245
  %1266 = vmatpush.msra.mxu0 %v1244
  %1267 = vmatpush.msra.mxu0 %v1243
  %1268 = vmatmul.f32.gmra.mxu0 %v1250
  %v1269 = vpop.f32.mrf.mxu0
  %v1270 = vadd.f32 %v1248, %v1269
  %1271 = vdwg.mxu0
  %v1272 = vsub.f32 0.0, %v1270
  %v1273 = vmul.f32 %v1272, 1.442695
  %v1274 = vpow.pop %v1273
  %v1275 = vadd.f32 %v1274, 1.0
  %v1276 = vrcp.pop %v1275
  %v1277 = vmul.f32 %v1270, %v1276
  %v1278 = vld [vmem:[%s2 + $0x218] sm:$0xff]
  %v1279 = vld [vmem:[%s2 + $0x220] sm:$0xff]
  %v1280 = vld [vmem:[%s2 + $0x228] sm:$0xff]
  %v1281 = vld [vmem:[%s2 + $0x230] sm:$0xff]
  %v1282 = vld [vmem:[%s2 + $0x238] sm:$0xff]
  %v1283 = vld [vmem:[%s2 + $0x240] sm:$0xff]
  %v1284 = vld [vmem:[%s2 + $0x248] sm:$0xff]
  %v1285 = vld [vmem:[%s2 + $0x250] sm:$0xff]
  %v1287 = vsel %vm357, %v1277, 0
  %1289 = vmatpush.msra.mxu0 0.0
  %1290 = vmatpush.msra.mxu0 0.0
  %1291 = vmatpush.msra.mxu0 0.0
  %1292 = vmatpush.msra.mxu0 0.0
  %1293 = vmatpush.msra.mxu0 0.0
  %1294 = vmatpush.msra.mxu0 0.0
  %1295 = vmatpush.msra.mxu0 0.0
  %1296 = vmatpush.msra.mxu0 0.0
  %1297 = vmatpush.msra.mxu0 %v1285
  %1298 = vmatpush.msra.mxu0 %v1284
  %1299 = vmatpush.msra.mxu0 %v1283
  %1300 = vmatpush.msra.mxu0 %v1282
  %1301 = vmatpush.msra.mxu0 %v1281
  %1302 = vmatpush.msra.mxu0 %v1280
  %1303 = vmatpush.msra.mxu0 %v1279
  %1304 = vmatpush.msra.mxu0 %v1278
  %1305 = vmatmul.f32.gmra.mxu0 %v1287
  %v1306 = vpop.f32.mrf.mxu0
  %v1307 = vadd.f32 0.0, %v1306
  %1308 = vdwg.mxu0
  %v1309 = vadd.f32 %v1242, %v1307
  %v1310 = vld [vmem:[%s3 + $0xc] sm:$0x1]
  %v1311 = vperm.slane %v1310, 0
  %v1312 = vadd.f32 %v1309, %v1311
  %1313 = vmatpush.msra.mxu0 0.0
  %1314 = vmatpush.msra.mxu0 0.0
  %1315 = vmatpush.msra.mxu0 0.0
  %1316 = vmatpush.msra.mxu0 0.0
  %1317 = vmatpush.msra.mxu0 0.0
  %1318 = vmatpush.msra.mxu0 0.0
  %1319 = vmatpush.msra.mxu0 0.0
  %1320 = vmatpush.msra.mxu0 0.0
  %1321 = vmatpush.msra.mxu0 0.0
  %1322 = vmatpush.msra.mxu0 0.0
  %1323 = vmatpush.msra.mxu0 0.0
  %1324 = vmatpush.msra.mxu0 0.0
  %1325 = vmatpush.msra.mxu0 0.0
  %1326 = vmatpush.msra.mxu0 0.0
  %1327 = vmatpush.msra.mxu0 0.0
  %1328 = vmatpush.msra.mxu0 %v1312
  %1329 = vmatmul.f32.gmra.mxu0 %v387
  %v1330 = vpop.f32.mrf.mxu0
  %v1331 = vadd.f32 0.0, %v1330
  %1332 = vmatmul.f32.gmra.mxu0 %v390
  %v1333 = vpop.f32.mrf.mxu0
  %v1334 = vadd.f32 0.0, %v1333
  %1335 = vmatmul.f32.gmra.mxu0 %v393
  %v1336 = vpop.f32.mrf.mxu0
  %v1337 = vadd.f32 0.0, %v1336
  %1338 = vmatmul.f32.gmra.mxu0 %v396
  %v1339 = vpop.f32.mrf.mxu0
  %v1340 = vadd.f32 0.0, %v1339
  %1341 = vmatmul.f32.gmra.mxu0 %v399
  %v1342 = vpop.f32.mrf.mxu0
  %v1343 = vadd.f32 0.0, %v1342
  %1344 = vmatmul.f32.gmra.mxu0 %v402
  %v1345 = vpop.f32.mrf.mxu0
  %v1346 = vadd.f32 0.0, %v1345
  %1347 = vmatmul.f32.gmra.mxu0 %v405
  %v1348 = vpop.f32.mrf.mxu0
  %v1349 = vadd.f32 0.0, %v1348
  %1350 = vmatmul.f32.gmra.mxu0 %v408
  %v1351 = vpop.f32.mrf.mxu0
  %v1352 = vadd.f32 0.0, %v1351
  %1353 = vmatmul.f32.gmra.mxu0 %v411
  %v1354 = vpop.f32.mrf.mxu0
  %v1355 = vadd.f32 0.0, %v1354
  %1356 = vmatmul.f32.gmra.mxu0 %v414
  %v1357 = vpop.f32.mrf.mxu0
  %v1358 = vadd.f32 0.0, %v1357
  %1359 = vmatmul.f32.gmra.mxu0 %v417
  %v1360 = vpop.f32.mrf.mxu0
  %v1361 = vadd.f32 0.0, %v1360
  %1362 = vmatmul.f32.gmra.mxu0 %v420
  %v1363 = vpop.f32.mrf.mxu0
  %v1364 = vadd.f32 0.0, %v1363
  %1365 = vmatmul.f32.gmra.mxu0 %v423
  %v1366 = vpop.f32.mrf.mxu0
  %v1367 = vadd.f32 0.0, %v1366
  %1368 = vmatmul.f32.gmra.mxu0 %v426
  %v1369 = vpop.f32.mrf.mxu0
  %v1370 = vadd.f32 0.0, %v1369
  %1371 = vdwg.mxu0
  %1379 = vrot.lane.b32.xlu0 %v1352, 32
  %v1380 = vpop.permute.xlu0 %1379
  %1381 = vrot.lane.b32.xlu0 %v1355, 32
  %v1382 = vpop.permute.xlu0 %1381
  %1383 = vrot.lane.b32.xlu0 %v1358, 32
  %v1384 = vpop.permute.xlu0 %1383
  %1385 = vrot.lane.b32.xlu0 %v1361, 32
  %v1386 = vpop.permute.xlu0 %1385
  %1387 = vrot.lane.b32.xlu0 %v1364, 32
  %v1388 = vpop.permute.xlu0 %1387
  %1389 = vrot.lane.b32.xlu0 %v1367, 32
  %v1390 = vpop.permute.xlu0 %1389
  %1391 = vrot.lane.b32.xlu0 %v1370, 32
  %v1392 = vpop.permute.xlu0 %1391
  %1407 = vrot.lane.b32.xlu0 %v1215, 64
  %v1408 = vpop.permute.xlu0 %1407
  %1409 = vrot.lane.b32.xlu0 %v1216, 64
  %v1410 = vpop.permute.xlu0 %1409
  %1411 = vrot.lane.b32.xlu0 %v1217, 64
  %v1412 = vpop.permute.xlu0 %1411
  %1413 = vrot.lane.b32.xlu0 %v1218, 64
  %v1414 = vpop.permute.xlu0 %1413
  %1415 = vrot.lane.b32.xlu0 %v1219, 64
  %v1416 = vpop.permute.xlu0 %1415
  %1417 = vrot.lane.b32.xlu0 %v1220, 64
  %v1418 = vpop.permute.xlu0 %1417
  %1419 = vrot.lane.b32.xlu0 %v1221, 64
  %v1420 = vpop.permute.xlu0 %1419
  %v1428 = vsel %vm156, %v1331, %v1380
  %v1429 = vsel %vm156, %v1334, %v1382
  %v1430 = vsel %vm156, %v1337, %v1384
  %v1431 = vsel %vm156, %v1340, %v1386
  %v1432 = vsel %vm156, %v1343, %v1388
  %v1433 = vsel %vm156, %v1346, %v1390
  %v1434 = vsel %vm156, %v1349, %v1392
  %v1435 = vsel %vm357, %v1428, %v1408
  %v1436 = vsel %vm357, %v1429, %v1410
  %v1437 = vsel %vm357, %v1430, %v1412
  %v1438 = vsel %vm357, %v1431, %v1414
  %v1439 = vsel %vm357, %v1432, %v1416
  %v1440 = vsel %vm357, %v1433, %v1418
  %v1441 = vsel %vm357, %v1434, %v1420
  %v1442 = vld [vmem:[%s2 + $0x258] sm:$0xff]
  %v1443 = vld [vmem:[%s2 + $0x260] sm:$0xff]
  %v1444 = vld [vmem:[%s2 + $0x268] sm:$0xff]
  %v1445 = vld [vmem:[%s2 + $0x270] sm:$0xff]
  %v1446 = vld [vmem:[%s2 + $0x278] sm:$0xff]
  %v1447 = vld [vmem:[%s2 + $0x280] sm:$0xff]
  %v1448 = vld [vmem:[%s2 + $0x288] sm:$0xff]
  %v1449 = vld [vmem:[%s2 + $0x290] sm:$0xff]
  %v1450 = vld [vmem:[%s2 + $0x298] sm:$0xff]
  %v1451 = vld [vmem:[%s2 + $0x2a0] sm:$0xff]
  %v1452 = vld [vmem:[%s2 + $0x2a8] sm:$0xff]
  %v1453 = vld [vmem:[%s2 + $0x2b0] sm:$0xff]
  %v1454 = vld [vmem:[%s3 + $0xd] sm:$0x1]
  %v1455 = vperm.slane %v1454, 0
  %v1457 = vsel %vm571, %v1435, 0
  %v1460 = vsel %vm571, %v1436, 0
  %v1463 = vsel %vm571, %v1437, 0
  %v1466 = vsel %vm571, %v1438, 0
  %v1469 = vsel %vm571, %v1439, 0
  %v1472 = vsel %vm571, %v1440, 0
  %v1475 = vsel %vm571, %v1441, 0
  %1477 = vmatpush.msra.mxu0 0.0
  %1478 = vmatpush.msra.mxu0 0.0
  %1479 = vmatpush.msra.mxu0 0.0
  %1480 = vmatpush.msra.mxu0 0.0
  %1481 = vmatpush.msra.mxu0 %v1453
  %1482 = vmatpush.msra.mxu0 %v1452
  %1483 = vmatpush.msra.mxu0 %v1451
  %1484 = vmatpush.msra.mxu0 %v1450
  %1485 = vmatpush.msra.mxu0 %v1449
  %1486 = vmatpush.msra.mxu0 %v1448
  %1487 = vmatpush.msra.mxu0 %v1447
  %1488 = vmatpush.msra.mxu0 %v1446
  %1489 = vmatpush.msra.mxu0 %v1445
  %1490 = vmatpush.msra.mxu0 %v1444
  %1491 = vmatpush.msra.mxu0 %v1443
  %1492 = vmatpush.msra.mxu0 %v1442
  %1493 = vmatmul.f32.gmra.mxu0 %v1457
  %v1494 = vpop.f32.mrf.mxu0
  %v1495 = vadd.f32 %v1455, %v1494
  %1496 = vmatmul.f32.gmra.mxu0 %v1460
  %v1497 = vpop.f32.mrf.mxu0
  %v1498 = vadd.f32 %v1455, %v1497
  %1499 = vmatmul.f32.gmra.mxu0 %v1463
  %v1500 = vpop.f32.mrf.mxu0
  %v1501 = vadd.f32 %v1455, %v1500
  %1502 = vmatmul.f32.gmra.mxu0 %v1466
  %v1503 = vpop.f32.mrf.mxu0
  %v1504 = vadd.f32 %v1455, %v1503
  %1505 = vmatmul.f32.gmra.mxu0 %v1469
  %v1506 = vpop.f32.mrf.mxu0
  %v1507 = vadd.f32 %v1455, %v1506
  %1508 = vmatmul.f32.gmra.mxu0 %v1472
  %v1509 = vpop.f32.mrf.mxu0
  %v1510 = vadd.f32 %v1455, %v1509
  %1511 = vmatmul.f32.gmra.mxu0 %v1475
  %v1512 = vpop.f32.mrf.mxu0
  %v1513 = vadd.f32 %v1455, %v1512
  %1514 = vdwg.mxu0
  %v1515 = vsub.f32 0.0, %v1495
  %v1516 = vsub.f32 0.0, %v1498
  %v1517 = vsub.f32 0.0, %v1501
  %v1518 = vsub.f32 0.0, %v1504
  %v1519 = vsub.f32 0.0, %v1507
  %v1520 = vsub.f32 0.0, %v1510
  %v1521 = vsub.f32 0.0, %v1513
  %v1522 = vmul.f32 %v1515, 1.442695
  %v1523 = vpow.pop %v1522
  %v1524 = vmul.f32 %v1516, 1.442695
  %v1525 = vpow.pop %v1524
  %v1526 = vmul.f32 %v1517, 1.442695
  %v1527 = vpow.pop %v1526
  %v1528 = vmul.f32 %v1518, 1.442695
  %v1529 = vpow.pop %v1528
  %v1530 = vmul.f32 %v1519, 1.442695
  %v1531 = vpow.pop %v1530
  %v1532 = vmul.f32 %v1520, 1.442695
  %v1533 = vpow.pop %v1532
  %v1534 = vmul.f32 %v1521, 1.442695
  %v1535 = vpow.pop %v1534
  %v1536 = vadd.f32 %v1523, 1.0
  %v1537 = vadd.f32 %v1525, 1.0
  %v1538 = vadd.f32 %v1527, 1.0
  %v1539 = vadd.f32 %v1529, 1.0
  %v1540 = vadd.f32 %v1531, 1.0
  %v1541 = vadd.f32 %v1533, 1.0
  %v1542 = vadd.f32 %v1535, 1.0
  %v1543 = vrcp.pop %v1536
  %v1544 = vrcp.pop %v1537
  %v1545 = vrcp.pop %v1538
  %v1546 = vrcp.pop %v1539
  %v1547 = vrcp.pop %v1540
  %v1548 = vrcp.pop %v1541
  %v1549 = vrcp.pop %v1542
  %v1550 = vmul.f32 %v1495, %v1543
  %v1551 = vmul.f32 %v1498, %v1544
  %v1552 = vmul.f32 %v1501, %v1545
  %v1553 = vmul.f32 %v1504, %v1546
  %v1554 = vmul.f32 %v1507, %v1547
  %v1555 = vmul.f32 %v1510, %v1548
  %v1556 = vmul.f32 %v1513, %v1549
  %v1557 = vld [vmem:[%s2 + $0x2b8] sm:$0xff]
  %v1558 = vld [vmem:[%s2 + $0x2c0] sm:$0xff]
  %v1559 = vld [vmem:[%s2 + $0x2c8] sm:$0xff]
  %v1560 = vld [vmem:[%s2 + $0x2d0] sm:$0xff]
  %v1561 = vld [vmem:[%s3 + $0xe] sm:$0x1]
  %v1562 = vperm.slane %v1561, 0
  %v1564 = vsel %vm156, %v1550, 0
  %v1567 = vsel %vm156, %v1551, 0
  %v1570 = vsel %vm156, %v1552, 0
  %v1573 = vsel %vm156, %v1553, 0
  %v1576 = vsel %vm156, %v1554, 0
  %v1579 = vsel %vm156, %v1555, 0
  %v1582 = vsel %vm156, %v1556, 0
  %1584 = vmatpush.msra.mxu0 0.0
  %1585 = vmatpush.msra.mxu0 0.0
  %1586 = vmatpush.msra.mxu0 0.0
  %1587 = vmatpush.msra.mxu0 0.0
  %1588 = vmatpush.msra.mxu0 0.0
  %1589 = vmatpush.msra.mxu0 0.0
  %1590 = vmatpush.msra.mxu0 0.0
  %1591 = vmatpush.msra.mxu0 0.0
  %1592 = vmatpush.msra.mxu0 0.0
  %1593 = vmatpush.msra.mxu0 0.0
  %1594 = vmatpush.msra.mxu0 0.0
  %1595 = vmatpush.msra.mxu0 0.0
  %1596 = vmatpush.msra.mxu0 %v1560
  %1597 = vmatpush.msra.mxu0 %v1559
  %1598 = vmatpush.msra.mxu0 %v1558
  %1599 = vmatpush.msra.mxu0 %v1557
  %1600 = vmatmul.f32.gmra.mxu0 %v1564
  %v1601 = vpop.f32.mrf.mxu0
  %v1602 = vadd.f32 %v1562, %v1601
  %1603 = vmatmul.f32.gmra.mxu0 %v1567
  %v1604 = vpop.f32.mrf.mxu0
  %v1605 = vadd.f32 %v1562, %v1604
  %1606 = vmatmul.f32.gmra.mxu0 %v1570
  %v1607 = vpop.f32.mrf.mxu0
  %v1608 = vadd.f32 %v1562, %v1607
  %1609 = vmatmul.f32.gmra.mxu0 %v1573
  %v1610 = vpop.f32.mrf.mxu0
  %v1611 = vadd.f32 %v1562, %v1610
  %1612 = vmatmul.f32.gmra.mxu0 %v1576
  %v1613 = vpop.f32.mrf.mxu0
  %v1614 = vadd.f32 %v1562, %v1613
  %1615 = vmatmul.f32.gmra.mxu0 %v1579
  %v1616 = vpop.f32.mrf.mxu0
  %v1617 = vadd.f32 %v1562, %v1616
  %1618 = vmatmul.f32.gmra.mxu0 %v1582
  %v1619 = vpop.f32.mrf.mxu0
  %v1620 = vadd.f32 %v1562, %v1619
  %1621 = vdwg.mxu0
  %v1622 = vsub.f32 0.0, %v1602
  %v1623 = vsub.f32 0.0, %v1605
  %v1624 = vsub.f32 0.0, %v1608
  %v1625 = vsub.f32 0.0, %v1611
  %v1626 = vsub.f32 0.0, %v1614
  %v1627 = vsub.f32 0.0, %v1617
  %v1628 = vsub.f32 0.0, %v1620
  %v1629 = vmul.f32 %v1622, 1.442695
  %v1630 = vpow.pop %v1629
  %v1631 = vmul.f32 %v1623, 1.442695
  %v1632 = vpow.pop %v1631
  %v1633 = vmul.f32 %v1624, 1.442695
  %v1634 = vpow.pop %v1633
  %v1635 = vmul.f32 %v1625, 1.442695
  %v1636 = vpow.pop %v1635
  %v1637 = vmul.f32 %v1626, 1.442695
  %v1638 = vpow.pop %v1637
  %v1639 = vmul.f32 %v1627, 1.442695
  %v1640 = vpow.pop %v1639
  %v1641 = vmul.f32 %v1628, 1.442695
  %v1642 = vpow.pop %v1641
  %v1643 = vadd.f32 %v1630, 1.0
  %v1644 = vadd.f32 %v1632, 1.0
  %v1645 = vadd.f32 %v1634, 1.0
  %v1646 = vadd.f32 %v1636, 1.0
  %v1647 = vadd.f32 %v1638, 1.0
  %v1648 = vadd.f32 %v1640, 1.0
  %v1649 = vadd.f32 %v1642, 1.0
  %v1650 = vrcp.pop %v1643
  %v1651 = vrcp.pop %v1644
  %v1652 = vrcp.pop %v1645
  %v1653 = vrcp.pop %v1646
  %v1654 = vrcp.pop %v1647
  %v1655 = vrcp.pop %v1648
  %v1656 = vrcp.pop %v1649
  %v1657 = vmul.f32 %v1602, %v1650
  %v1658 = vmul.f32 %v1605, %v1651
  %v1659 = vmul.f32 %v1608, %v1652
  %v1660 = vmul.f32 %v1611, %v1653
  %v1661 = vmul.f32 %v1614, %v1654
  %v1662 = vmul.f32 %v1617, %v1655
  %v1663 = vmul.f32 %v1620, %v1656
  %1664 = vmatpush.msra.mxu0 0.0
  %1665 = vmatpush.msra.mxu0 0.0
  %1666 = vmatpush.msra.mxu0 0.0
  %1667 = vmatpush.msra.mxu0 0.0
  %1668 = vmatpush.msra.mxu0 0.0
  %1669 = vmatpush.msra.mxu0 0.0
  %1670 = vmatpush.msra.mxu0 0.0
  %1671 = vmatpush.msra.mxu0 0.0
  %1672 = vmatpush.msra.mxu0 0.0
  %1673 = vmatpush.msra.mxu0 %v1663
  %1674 = vmatpush.msra.mxu0 %v1662
  %1675 = vmatpush.msra.mxu0 %v1661
  %1676 = vmatpush.msra.mxu0 %v1660
  %1677 = vmatpush.msra.mxu0 %v1659
  %1678 = vmatpush.msra.mxu0 %v1658
  %1679 = vmatpush.msra.mxu0 %v1657
  %1680 = vmatmul.f32.gmra.mxu0 %v291
  %v1681 = vpop.f32.mrf.mxu0
  %v1682 = vadd.f32 0.0, %v1681
  %1683 = vdwg.mxu0
  %v1684 = vadd.f32 %v1312, %v1682
  %v1685 = vld [vmem:[%s2 + $0x2d8] sm:$0xff]
  %v1686 = vld [vmem:[%s2 + $0x2e0] sm:$0xff]
  %v1687 = vld [vmem:[%s2 + $0x2e8] sm:$0xff]
  %v1688 = vld [vmem:[%s2 + $0x2f0] sm:$0xff]
  %v1689 = vld [vmem:[%s3 + $0xf] sm:$0x1]
  %v1690 = vperm.slane %v1689, 0
  %v1692 = vsel %vm156, %v1684, 0
  %1694 = vmatpush.msra.mxu0 0.0
  %1695 = vmatpush.msra.mxu0 0.0
  %1696 = vmatpush.msra.mxu0 0.0
  %1697 = vmatpush.msra.mxu0 0.0
  %1698 = vmatpush.msra.mxu0 0.0
  %1699 = vmatpush.msra.mxu0 0.0
  %1700 = vmatpush.msra.mxu0 0.0
  %1701 = vmatpush.msra.mxu0 0.0
  %1702 = vmatpush.msra.mxu0 0.0
  %1703 = vmatpush.msra.mxu0 0.0
  %1704 = vmatpush.msra.mxu0 0.0
  %1705 = vmatpush.msra.mxu0 0.0
  %1706 = vmatpush.msra.mxu0 %v1688
  %1707 = vmatpush.msra.mxu0 %v1687
  %1708 = vmatpush.msra.mxu0 %v1686
  %1709 = vmatpush.msra.mxu0 %v1685
  %1710 = vmatmul.f32.gmra.mxu0 %v1692
  %v1711 = vpop.f32.mrf.mxu0
  %v1712 = vadd.f32 %v1690, %v1711
  %1713 = vdwg.mxu0
  %v1714 = vsub.f32 0.0, %v1712
  %v1715 = vmul.f32 %v1714, 1.442695
  %v1716 = vpow.pop %v1715
  %v1717 = vadd.f32 %v1716, 1.0
  %v1718 = vrcp.pop %v1717
  %v1719 = vmul.f32 %v1712, %v1718
  %v1720 = vld [vmem:[%s2 + $0x2f8] sm:$0xff]
  %v1721 = vld [vmem:[%s2 + $0x300] sm:$0xff]
  %v1722 = vld [vmem:[%s2 + $0x308] sm:$0xff]
  %v1723 = vld [vmem:[%s2 + $0x310] sm:$0xff]
  %v1724 = vld [vmem:[%s2 + $0x318] sm:$0xff]
  %v1725 = vld [vmem:[%s2 + $0x320] sm:$0xff]
  %v1726 = vld [vmem:[%s2 + $0x328] sm:$0xff]
  %v1727 = vld [vmem:[%s2 + $0x330] sm:$0xff]
  %v1729 = vsel %vm357, %v1719, 0
  %1731 = vmatpush.msra.mxu0 0.0
  %1732 = vmatpush.msra.mxu0 0.0
  %1733 = vmatpush.msra.mxu0 0.0
  %1734 = vmatpush.msra.mxu0 0.0
  %1735 = vmatpush.msra.mxu0 0.0
  %1736 = vmatpush.msra.mxu0 0.0
  %1737 = vmatpush.msra.mxu0 0.0
  %1738 = vmatpush.msra.mxu0 0.0
  %1739 = vmatpush.msra.mxu0 %v1727
  %1740 = vmatpush.msra.mxu0 %v1726
  %1741 = vmatpush.msra.mxu0 %v1725
  %1742 = vmatpush.msra.mxu0 %v1724
  %1743 = vmatpush.msra.mxu0 %v1723
  %1744 = vmatpush.msra.mxu0 %v1722
  %1745 = vmatpush.msra.mxu0 %v1721
  %1746 = vmatpush.msra.mxu0 %v1720
  %1747 = vmatmul.f32.gmra.mxu0 %v1729
  %v1748 = vpop.f32.mrf.mxu0
  %v1749 = vadd.f32 0.0, %v1748
  %1750 = vdwg.mxu0
  %v1751 = vadd.f32 %v1684, %v1749
  %v1752 = vld [vmem:[%s3 + $0x10] sm:$0x1]
  %v1753 = vperm.slane %v1752, 0
  %v1754 = vadd.f32 %v1751, %v1753
  %v1755 = vld [vmem:[%s2 + $0x338] sm:$0xff]
  %v1756 = vld [vmem:[%s2 + $0x340] sm:$0xff]
  %v1757 = vld [vmem:[%s2 + $0x348] sm:$0xff]
  %v1758 = vld [vmem:[%s2 + $0x350] sm:$0xff]
  %v1759 = vld [vmem:[%s3 + $0x11] sm:$0x1]
  %v1760 = vperm.slane %v1759, 0
  %v1762 = vsel %vm156, %v1754, 0
  %1764 = vmatpush.msra.mxu0 0.0
  %1765 = vmatpush.msra.mxu0 0.0
  %1766 = vmatpush.msra.mxu0 0.0
  %1767 = vmatpush.msra.mxu0 0.0
  %1768 = vmatpush.msra.mxu0 0.0
  %1769 = vmatpush.msra.mxu0 0.0
  %1770 = vmatpush.msra.mxu0 0.0
  %1771 = vmatpush.msra.mxu0 0.0
  %1772 = vmatpush.msra.mxu0 0.0
  %1773 = vmatpush.msra.mxu0 0.0
  %1774 = vmatpush.msra.mxu0 0.0
  %1775 = vmatpush.msra.mxu0 0.0
  %1776 = vmatpush.msra.mxu0 %v1758
  %1777 = vmatpush.msra.mxu0 %v1757
  %1778 = vmatpush.msra.mxu0 %v1756
  %1779 = vmatpush.msra.mxu0 %v1755
  %1780 = vmatmul.f32.gmra.mxu0 %v1762
  %v1781 = vpop.f32.mrf.mxu0
  %v1782 = vadd.f32 %v1760, %v1781
  %1783 = vdwg.mxu0
  %v1784 = vsub.f32 0.0, %v1782
  %v1785 = vmul.f32 %v1784, 1.442695
  %v1786 = vpow.pop %v1785
  %v1787 = vadd.f32 %v1786, 1.0
  %v1788 = vrcp.pop %v1787
  %v1789 = vmul.f32 %v1782, %v1788
  %v1790 = vld [vmem:[%s2 + $0x358] sm:$0xff]
  %v1791 = vld [vmem:[%s2 + $0x360] sm:$0xff]
  %v1792 = vld [vmem:[%s2 + $0x368] sm:$0xff]
  %v1793 = vld [vmem:[%s2 + $0x370] sm:$0xff]
  %v1794 = vld [vmem:[%s3 + $0x12] sm:$0x1]
  %v1795 = vperm.slane %v1794, 0
  %v1797 = vsel %vm156, %v1789, 0
  %1799 = vmatpush.msra.mxu0 0.0
  %1800 = vmatpush.msra.mxu0 0.0
  %1801 = vmatpush.msra.mxu0 0.0
  %1802 = vmatpush.msra.mxu0 0.0
  %1803 = vmatpush.msra.mxu0 0.0
  %1804 = vmatpush.msra.mxu0 0.0
  %1805 = vmatpush.msra.mxu0 0.0
  %1806 = vmatpush.msra.mxu0 0.0
  %1807 = vmatpush.msra.mxu0 0.0
  %1808 = vmatpush.msra.mxu0 0.0
  %1809 = vmatpush.msra.mxu0 0.0
  %1810 = vmatpush.msra.mxu0 0.0
  %1811 = vmatpush.msra.mxu0 %v1793
  %1812 = vmatpush.msra.mxu0 %v1792
  %1813 = vmatpush.msra.mxu0 %v1791
  %1814 = vmatpush.msra.mxu0 %v1790
  %1815 = vmatmul.f32.gmra.mxu0 %v1797
  %v1816 = vpop.f32.mrf.mxu0
  %v1817 = vadd.f32 %v1795, %v1816
  %1818 = vdwg.mxu0
  %v1819 = vsub.f32 0.0, %v1817
  %v1820 = vmul.f32 %v1819, 1.442695
  %v1821 = vpow.pop %v1820
  %v1822 = vadd.f32 %v1821, 1.0
  %v1823 = vrcp.pop %v1822
  %v1824 = vmul.f32 %v1817, %v1823
  %v1825 = vld [vmem:[%s2 + $0x378] sm:$0xff]
  %v1826 = vld [vmem:[%s2 + $0x380] sm:$0xff]
  %v1827 = vld [vmem:[%s2 + $0x388] sm:$0xff]
  %v1828 = vld [vmem:[%s2 + $0x390] sm:$0xff]
  %v1829 = vld [vmem:[%s3 + $0x13] sm:$0x1]
  %v1830 = vperm.slane %v1829, 0
  %v1832 = vsel %vm156, %v1824, 0
  %1834 = vmatpush.msra.mxu0 0.0
  %1835 = vmatpush.msra.mxu0 0.0
  %1836 = vmatpush.msra.mxu0 0.0
  %1837 = vmatpush.msra.mxu0 0.0
  %1838 = vmatpush.msra.mxu0 0.0
  %1839 = vmatpush.msra.mxu0 0.0
  %1840 = vmatpush.msra.mxu0 0.0
  %1841 = vmatpush.msra.mxu0 0.0
  %1842 = vmatpush.msra.mxu0 0.0
  %1843 = vmatpush.msra.mxu0 0.0
  %1844 = vmatpush.msra.mxu0 0.0
  %1845 = vmatpush.msra.mxu0 0.0
  %1846 = vmatpush.msra.mxu0 %v1828
  %1847 = vmatpush.msra.mxu0 %v1827
  %1848 = vmatpush.msra.mxu0 %v1826
  %1849 = vmatpush.msra.mxu0 %v1825
  %1850 = vmatmul.f32.gmra.mxu0 %v1832
  %v1851 = vpop.f32.mrf.mxu0
  %v1852 = vadd.f32 %v1830, %v1851
  %1853 = vdwg.mxu0
  %1854 = vst [vmem:[%s4] sm:$0xff] %v1852
  // Predicated region
  $region18: #{forward.1} parent=0 // pred_check
    _
  $region19: #{forward.1} parent=0 // pred_check_branch
    %1856 = sbr.rel (0) target = $region21
  $region20: #{forward.1} parent=0 // pred_region
    _
  $region21: #{forward.1} parent=0 // pred_fallthru
    _
  // Predicated region
  $region22: #{forward.1} parent=0 // pred_check
    _
  $region23: #{forward.1} parent=0 // pred_check_branch
    %1858 = sbr.rel (0) target = $region25
  $region24: #{forward.1} parent=0 // pred_region
    _
  $region25: #{forward.1} parent=0 // pred_fallthru
    _

</llo_original>
